<compile_context>
chip_gen: v5e
topology: v5e:2x2
jax: 0.10.0
libtpu: 0.0.40
codegen_flags: <defaults>
</compile_context>

<pallas_src>
import jax
import jax.numpy as jnp
from jax.experimental import pallas as pl
from jax.experimental.pallas import tpu as pltpu

HIDDEN = 100   # logical hidden size of the PyTorch head
H_PAD = 128    # lane-padded hidden size used inside the kernel


def _round_up(a, b):
    return (a + b - 1) // b * b


def resnet_cnn_ex_kernel(x0_ref, x1_ref, x2_ref, w1_ref, b1_ref, w2_ref,
                         b2_ref, wp_ref, bp_ref, out_ref, acc_ref):
    k = pl.program_id(1)

    # ---- first Linear: accumulate over the F reduction in f32 scratch ----
    @pl.when(k == 0)
    def _init():
        acc_ref[...] = jnp.zeros_like(acc_ref)

    x_refs = (x0_ref, x1_ref, x2_ref)
    for v in range(3):  # static unroll over the 3 views (separate weights each)
        acc_ref[v] += jnp.dot(x_refs[v][...], w1_ref[v],
                              preferred_element_type=jnp.float32)

    # ---- epilogue: ReLU, second Linear, saliency, pooling, post Linear ----
    @pl.when(k == pl.num_programs(1) - 1)
    def _epilogue():
        feats = []
        for v in range(3):
            h = jnp.maximum(acc_ref[v] + b1_ref[v], 0.0)             # (tm,128)
            f = jnp.dot(h.astype(jnp.bfloat16), w2_ref[v],
                        preferred_element_type=jnp.float32) + b2_ref[v]
            feats.append(jnp.maximum(f, 0.0))                         # (tm,128)

        # ViewSaliencyLayer: only the 3 unique pairwise L2 distances are needed
        # (diagonal is exactly zero, matching the masked_fill in PyTorch).
        def pair_dist(a, b):
            d = a - b
            return jnp.sqrt(jnp.sum(d * d, axis=-1, keepdims=True))   # (tm,1)

        d01 = pair_dist(feats[0], feats[1])
        d02 = pair_dist(feats[0], feats[2])
        d12 = pair_dist(feats[1], feats[2])
        s0 = d01 + d02
        s1 = d01 + d12
        s2 = d02 + d12
        inv = pl.reciprocal(s0 + s1 + s2 + 1e-10, approx=True)
        # SaliencyBasedPoolingLayer: saliency-weighted sum over views.
        pooled = (s0 * inv) * feats[0] + (s1 * inv) * feats[1] + (s2 * inv) * feats[2]

        # post: Linear(100,1) + ReLU, computed as a lane-dense (tm,128) tile
        # (wp zero-padded to 128 output columns; real result is column 0).
        out = jnp.dot(pooled.astype(jnp.bfloat16), wp_ref[...],
                      preferred_element_type=jnp.float32) + bp_ref[...]
        out_ref[...] = jnp.maximum(out, 0.0)


def resnet_cnn_ex_forward(x, params):
    """x: [B, 3, C, H, W] float32. Returns [B, 1] float32."""
    B, V, C, H, W = x.shape
    assert V == 3
    F = C * H * W
    w1, b1, w2, b2, wp, bp = params

    # ---- tile sizing (8-aligned batch tiles, 128/256/512/1024 F tiles) ----
    tm = 128 if B >= 128 else _round_up(max(B, 1), 8)
    B_pad = _round_up(B, tm)
    F_pad = _round_up(F, 128)
    tk = 128
    for cand in (1024, 512, 256):
        if F_pad % cand == 0:
            tk = cand
            break
    nk = F_pad // tk
    grid = (B_pad // tm, nk)

    # ---- pack inputs: [B,3,C,H,W] -> [B_pad, 3*F_pad] bf16 (no HBM transpose) ----
    x_flat = x.reshape(B, V, F).astype(jnp.bfloat16)
    x_flat = jnp.pad(x_flat, ((0, B_pad - B), (0, 0), (0, F_pad - F)))
    x2d = x_flat.reshape(B_pad, V * F_pad)

    # ---- pad params: HIDDEN 100 -> 128 lanes, F -> F_pad; bf16 MXU operands ----
    hp = H_PAD - HIDDEN
    w1p = jnp.pad(w1, ((0, 0), (0, F_pad - F), (0, hp))).astype(jnp.bfloat16)
    b1p = jnp.pad(b1, ((0, 0), (0, 0), (0, hp))).astype(jnp.float32)
    w2p = jnp.pad(w2, ((0, 0), (0, hp), (0, hp))).astype(jnp.bfloat16)
    b2p = jnp.pad(b2, ((0, 0), (0, 0), (0, hp))).astype(jnp.float32)
    wpp = jnp.pad(wp, ((0, hp), (0, H_PAD - 1))).astype(jnp.bfloat16)
    bpp = jnp.pad(bp, ((0, 0), (0, H_PAD - 1))).astype(jnp.float32)

    def x_spec(v):
        # view v's features live in column blocks [v*nk, (v+1)*nk) of x2d
        return pl.BlockSpec((tm, tk), lambda m, k, v=v: (m, v * nk + k))

    in_specs = [
        x_spec(0), x_spec(1), x_spec(2),
        pl.BlockSpec((3, tk, H_PAD), lambda m, k: (0, k, 0)),      # w1 (streamed over F)
        pl.BlockSpec((3, 1, H_PAD), lambda m, k: (0, 0, 0)),       # b1 (resident)
        pl.BlockSpec((3, H_PAD, H_PAD), lambda m, k: (0, 0, 0)),   # w2 (resident)
        pl.BlockSpec((3, 1, H_PAD), lambda m, k: (0, 0, 0)),       # b2 (resident)
        pl.BlockSpec((H_PAD, H_PAD), lambda m, k: (0, 0)),         # wp (resident)
        pl.BlockSpec((1, H_PAD), lambda m, k: (0, 0)),             # bp (resident)
    ]
    out_specs = pl.BlockSpec((tm, H_PAD), lambda m, k: (m, 0))

    flops = (2 * B_pad * F_pad * H_PAD * 3      # first Linear (3 views)
             + 2 * B_pad * H_PAD * H_PAD * 3    # second Linear (3 views)
             + 2 * B_pad * H_PAD * H_PAD)       # post Linear (padded)
    bytes_accessed = (x2d.size * 2 + w1p.size * 2 + w2p.size * 2 + wpp.size * 2
                      + (b1p.size + b2p.size + bpp.size) * 4
                      + B_pad * H_PAD * 4)
    cost = pl.CostEstimate(flops=flops, transcendentals=4 * B_pad,
                           bytes_accessed=bytes_accessed)

    out_padded = pl.pallas_call(
        resnet_cnn_ex_kernel,
        out_shape=jax.ShapeDtypeStruct((B_pad, H_PAD), jnp.float32),
        grid_spec=pltpu.PrefetchScalarGridSpec(
            num_scalar_prefetch=0,
            grid=grid,
            in_specs=in_specs,
            out_specs=out_specs,
            scratch_shapes=[pltpu.VMEM((3, tm, H_PAD), jnp.float32)],
        ),
        compiler_params=pltpu.CompilerParams(
            dimension_semantics=("parallel", "arbitrary"),
            vmem_limit_bytes=32 * 1024 * 1024,
        ),
        cost_estimate=cost,
    )(x2d, x2d, x2d, w1p, b1p, w2p, b2p, wpp, bpp)

    return out_padded[:B, :1]


def init_params(key, feat_dim):
    """Deterministic synthetic weights; Linear stored as (in, out)."""
    ks = jax.random.split(key, 6)
    s = 0.05
    w1 = jax.random.normal(ks[0], (3, feat_dim, HIDDEN), jnp.float32) * s
    b1 = jax.random.normal(ks[1], (3, 1, HIDDEN), jnp.float32) * s
    w2 = jax.random.normal(ks[2], (3, HIDDEN, HIDDEN), jnp.float32) * s
    b2 = jax.random.normal(ks[3], (3, 1, HIDDEN), jnp.float32) * s
    wp = jax.random.normal(ks[4], (HIDDEN, 1), jnp.float32) * s
    bp = jax.random.normal(ks[5], (1, 1), jnp.float32) * s
    return (w1, b1, w2, b2, wp, bp)


def reference_forward(x, params):
    """Pure-JAX reference of the same math (bf16 MXU operands, f32 accum)."""
    B, V, C, H, W = x.shape
    F = C * H * W
    xf = x.reshape(B, V, F)
    w1, b1, w2, b2, wp, bp = params
    feats = []
    for v in range(3):
        h = jnp.dot(xf[:, v].astype(jnp.bfloat16), w1[v].astype(jnp.bfloat16),
                    preferred_element_type=jnp.float32) + b1[v]
        h = jnp.maximum(h, 0.0)
        f = jnp.dot(h.astype(jnp.bfloat16), w2[v].astype(jnp.bfloat16),
                    preferred_element_type=jnp.float32) + b2[v]
        feats.append(jnp.maximum(f, 0.0))

    def dist(a, b):
        d = a - b
        return jnp.sqrt(jnp.sum(d * d, axis=-1, keepdims=True))

    d01 = dist(feats[0], feats[1])
    d02 = dist(feats[0], feats[2])
    d12 = dist(feats[1], feats[2])
    s = [d01 + d02, d01 + d12, d02 + d12]
    total = s[0] + s[1] + s[2]
    r = [si / (total + 1e-10) for si in s]
    pooled = r[0] * feats[0] + r[1] * feats[1] + r[2] * feats[2]
    out = jnp.dot(pooled.astype(jnp.bfloat16), wp.astype(jnp.bfloat16),
                  preferred_element_type=jnp.float32) + bp
    return jnp.maximum(out, 0.0)


if __name__ == "__main__":
    key = jax.random.PRNGKey(0)
    kx, kp = jax.random.split(key)
    B, V, C, H, W = 2, 3, 3, 16, 16
    x = jax.random.normal(kx, (B, V, C, H, W), jnp.float32)
    params = init_params(kp, C * H * W)

    fwd = jax.jit(resnet_cnn_ex_forward)
    out = jax.block_until_ready(fwd(x, params))

    ref = reference_forward(x, params)
    assert out.shape == (B, 1)
    assert bool(jnp.all(jnp.isfinite(out)))
    assert bool(jnp.allclose(out, ref, rtol=2e-2, atol=2e-3))
    print("KERNEL_OK")
</pallas_src>

<mosaic_0001>
module attributes {stable_mosaic.version = 11 : i64} {
  func.func @resnet_cnn_ex_kernel(%arg0: i32, %arg1: i32, %arg2: memref<8x256xbf16, #tpu.memory_space<vmem>>, %arg3: memref<8x256xbf16, #tpu.memory_space<vmem>>, %arg4: memref<8x256xbf16, #tpu.memory_space<vmem>>, %arg5: memref<3x256x128xbf16, #tpu.memory_space<vmem>>, %arg6: memref<3x1x128xf32, #tpu.memory_space<vmem>>, %arg7: memref<3x128x128xbf16, #tpu.memory_space<vmem>>, %arg8: memref<3x1x128xf32, #tpu.memory_space<vmem>>, %arg9: memref<128x128xbf16, #tpu.memory_space<vmem>>, %arg10: memref<1x128xf32, #tpu.memory_space<vmem>>, %arg11: memref<8x128xf32, #tpu.memory_space<vmem>>, %arg12: memref<3x8x128xf32, #tpu.memory_space<vmem>>) attributes {dimension_semantics = [#tpu.dimension_semantics<parallel>, #tpu.dimension_semantics<arbitrary>], iteration_bounds = array<i64: 1, 3>, scalar_prefetch = 0 : i64, scratch_operands = 1 : i64, tpu.core_type = #tpu.core_type<tc>, window_params = [{transform_indices = @transform_0, window_bounds = array<i64: 8, 256>}, {transform_indices = @transform_1, window_bounds = array<i64: 8, 256>}, {transform_indices = @transform_2, window_bounds = array<i64: 8, 256>}, {transform_indices = @transform_3, window_bounds = array<i64: 3, 256, 128>}, {pipeline_mode = #tpu.pipeline_mode<synchronous>, transform_indices = @transform_4, window_bounds = array<i64: 3, 1, 128>}, {pipeline_mode = #tpu.pipeline_mode<synchronous>, transform_indices = @transform_5, window_bounds = array<i64: 3, 128, 128>}, {pipeline_mode = #tpu.pipeline_mode<synchronous>, transform_indices = @transform_6, window_bounds = array<i64: 3, 1, 128>}, {pipeline_mode = #tpu.pipeline_mode<synchronous>, transform_indices = @transform_7, window_bounds = array<i64: 128, 128>}, {pipeline_mode = #tpu.pipeline_mode<synchronous>, transform_indices = @transform_8, window_bounds = array<i64: 1, 128>}, {transform_indices = @transform_9, window_bounds = array<i64: 8, 128>}]} {
    %c0_i32 = arith.constant 0 : i32
    %0 = arith.cmpi eq, %arg1, %c0_i32 : i32
    %1 = arith.extui %0 : i1 to i32
    %c0_i32_0 = arith.constant 0 : i32
    %2 = arith.cmpi ne, %1, %c0_i32_0 : i32
    scf.if %2 {
      %cst_34 = arith.constant 0.000000e+00 : f32
      %36 = vector.broadcast %cst_34 : f32 to vector<3x8x128xf32>
      %c0_35 = arith.constant 0 : index
      %c0_36 = arith.constant 0 : index
      %c0_37 = arith.constant 0 : index
      %37 = vector.load %arg12[%c0_35, %c0_36, %c0_37] : memref<3x8x128xf32, #tpu.memory_space<vmem>>, vector<3x8x128xf32>
      tpu.vector_store %arg12[%c0_35, %c0_36, %c0_37], %36 {strides = array<i32>} : memref<3x8x128xf32, #tpu.memory_space<vmem>>, vector<3x8x128xf32>,
    } else {
    }
    %c0 = arith.constant 0 : index
    %c0_1 = arith.constant 0 : index
    %c0_2 = arith.constant 0 : index
    %3 = vector.load %arg12[%c0, %c0_1, %c0_2] : memref<3x8x128xf32, #tpu.memory_space<vmem>>, vector<1x8x128xf32>
    %4 = vector.shape_cast %3 : vector<1x8x128xf32> to vector<8x128xf32>
    %c0_3 = arith.constant 0 : index
    %c0_4 = arith.constant 0 : index
    %5 = vector.load %arg2[%c0_3, %c0_4] : memref<8x256xbf16, #tpu.memory_space<vmem>>, vector<8x256xbf16>
    %c0_5 = arith.constant 0 : index
    %c0_6 = arith.constant 0 : index
    %c0_7 = arith.constant 0 : index
    %6 = vector.load %arg5[%c0_5, %c0_6, %c0_7] : memref<3x256x128xbf16, #tpu.memory_space<vmem>>, vector<1x256x128xbf16>
    %7 = vector.shape_cast %6 : vector<1x256x128xbf16> to vector<256x128xbf16>
    %cst = arith.constant dense<0.000000e+00> : vector<8x128xf32>
    %8 = tpu.matmul %5, %7, %cst {dimension_numbers = #tpu.dot_dimension_numbers<[1], [0], [0], [1], [0, 0, 1, 1], [], []>} : vector<8x256xbf16>, vector<256x128xbf16>, vector<8x128xf32> -> vector<8x128xf32>
    %9 = arith.addf %4, %8 : vector<8x128xf32>
    %c0_8 = arith.constant 0 : index
    %c0_9 = arith.constant 0 : index
    %c0_10 = arith.constant 0 : index
    %10 = vector.load %arg12[%c0_8, %c0_9, %c0_10] : memref<3x8x128xf32, #tpu.memory_space<vmem>>, vector<1x8x128xf32>
    %11 = vector.shape_cast %10 : vector<1x8x128xf32> to vector<8x128xf32>
    %12 = vector.shape_cast %9 : vector<8x128xf32> to vector<1x8x128xf32>
    tpu.vector_store %arg12[%c0_8, %c0_9, %c0_10], %12 {strides = array<i32>} : memref<3x8x128xf32, #tpu.memory_space<vmem>>, vector<1x8x128xf32>,
    %c1 = arith.constant 1 : index
    %c0_11 = arith.constant 0 : index
    %c0_12 = arith.constant 0 : index
    %13 = vector.load %arg12[%c1, %c0_11, %c0_12] : memref<3x8x128xf32, #tpu.memory_space<vmem>>, vector<1x8x128xf32>
    %14 = vector.shape_cast %13 : vector<1x8x128xf32> to vector<8x128xf32>
    %c0_13 = arith.constant 0 : index
    %c0_14 = arith.constant 0 : index
    %15 = vector.load %arg3[%c0_13, %c0_14] : memref<8x256xbf16, #tpu.memory_space<vmem>>, vector<8x256xbf16>
    %c1_15 = arith.constant 1 : index
    %c0_16 = arith.constant 0 : index
    %c0_17 = arith.constant 0 : index
    %16 = vector.load %arg5[%c1_15, %c0_16, %c0_17] : memref<3x256x128xbf16, #tpu.memory_space<vmem>>, vector<1x256x128xbf16>
    %17 = vector.shape_cast %16 : vector<1x256x128xbf16> to vector<256x128xbf16>
    %cst_18 = arith.constant dense<0.000000e+00> : vector<8x128xf32>
    %18 = tpu.matmul %15, %17, %cst_18 {dimension_numbers = #tpu.dot_dimension_numbers<[1], [0], [0], [1], [0, 0, 1, 1], [], []>} : vector<8x256xbf16>, vector<256x128xbf16>, vector<8x128xf32> -> vector<8x128xf32>
    %19 = arith.addf %14, %18 : vector<8x128xf32>
    %c1_19 = arith.constant 1 : index
    %c0_20 = arith.constant 0 : index
    %c0_21 = arith.constant 0 : index
    %20 = vector.load %arg12[%c1_19, %c0_20, %c0_21] : memref<3x8x128xf32, #tpu.memory_space<vmem>>, vector<1x8x128xf32>
    %21 = vector.shape_cast %20 : vector<1x8x128xf32> to vector<8x128xf32>
    %22 = vector.shape_cast %19 : vector<8x128xf32> to vector<1x8x128xf32>
    tpu.vector_store %arg12[%c1_19, %c0_20, %c0_21], %22 {strides = array<i32>} : memref<3x8x128xf32, #tpu.memory_space<vmem>>, vector<1x8x128xf32>,
    %c2 = arith.constant 2 : index
    %c0_22 = arith.constant 0 : index
    %c0_23 = arith.constant 0 : index
    %23 = vector.load %arg12[%c2, %c0_22, %c0_23] : memref<3x8x128xf32, #tpu.memory_space<vmem>>, vector<1x8x128xf32>
    %24 = vector.shape_cast %23 : vector<1x8x128xf32> to vector<8x128xf32>
    %c0_24 = arith.constant 0 : index
    %c0_25 = arith.constant 0 : index
    %25 = vector.load %arg4[%c0_24, %c0_25] : memref<8x256xbf16, #tpu.memory_space<vmem>>, vector<8x256xbf16>
    %c2_26 = arith.constant 2 : index
    %c0_27 = arith.constant 0 : index
    %c0_28 = arith.constant 0 : index
    %26 = vector.load %arg5[%c2_26, %c0_27, %c0_28] : memref<3x256x128xbf16, #tpu.memory_space<vmem>>, vector<1x256x128xbf16>
    %27 = vector.shape_cast %26 : vector<1x256x128xbf16> to vector<256x128xbf16>
    %cst_29 = arith.constant dense<0.000000e+00> : vector<8x128xf32>
    %28 = tpu.matmul %25, %27, %cst_29 {dimension_numbers = #tpu.dot_dimension_numbers<[1], [0], [0], [1], [0, 0, 1, 1], [], []>} : vector<8x256xbf16>, vector<256x128xbf16>, vector<8x128xf32> -> vector<8x128xf32>
    %29 = arith.addf %24, %28 : vector<8x128xf32>
    %c2_30 = arith.constant 2 : index
    %c0_31 = arith.constant 0 : index
    %c0_32 = arith.constant 0 : index
    %30 = vector.load %arg12[%c2_30, %c0_31, %c0_32] : memref<3x8x128xf32, #tpu.memory_space<vmem>>, vector<1x8x128xf32>
    %31 = vector.shape_cast %30 : vector<1x8x128xf32> to vector<8x128xf32>
    %32 = vector.shape_cast %29 : vector<8x128xf32> to vector<1x8x128xf32>
    tpu.vector_store %arg12[%c2_30, %c0_31, %c0_32], %32 {strides = array<i32>} : memref<3x8x128xf32, #tpu.memory_space<vmem>>, vector<1x8x128xf32>,
    %c2_i32 = arith.constant 2 : i32
    %33 = arith.cmpi eq, %arg1, %c2_i32 : i32
    %34 = arith.extui %33 : i1 to i32
    %c0_i32_33 = arith.constant 0 : i32
    %35 = arith.cmpi ne, %34, %c0_i32_33 : i32
    scf.if %35 {
      %c0_34 = arith.constant 0 : index
      %c0_35 = arith.constant 0 : index
      %c0_36 = arith.constant 0 : index
      %36 = vector.load %arg12[%c0_34, %c0_35, %c0_36] : memref<3x8x128xf32, #tpu.memory_space<vmem>>, vector<1x8x128xf32>
      %37 = vector.shape_cast %36 : vector<1x8x128xf32> to vector<8x128xf32>
      %c0_37 = arith.constant 0 : index
      %c0_38 = arith.constant 0 : index
      %c0_39 = arith.constant 0 : index
      %38 = vector.load %arg6[%c0_37, %c0_38, %c0_39] : memref<3x1x128xf32, #tpu.memory_space<vmem>>, vector<1x1x128xf32>
      %39 = vector.shape_cast %38 : vector<1x1x128xf32> to vector<1x128xf32>
      %40 = vector.broadcast %39 : vector<1x128xf32> to vector<8x128xf32>
      %41 = arith.addf %37, %40 : vector<8x128xf32>
      %cst_40 = arith.constant 0.000000e+00 : f32
      %42 = vector.broadcast %cst_40 : f32 to vector<8x128xf32>
      %43 = arith.maximumf %41, %42 : vector<8x128xf32>
      %44 = arith.truncf %43 : vector<8x128xf32> to vector<8x128xbf16>
      %c0_41 = arith.constant 0 : index
      %c0_42 = arith.constant 0 : index
      %c0_43 = arith.constant 0 : index
      %45 = vector.load %arg7[%c0_41, %c0_42, %c0_43] : memref<3x128x128xbf16, #tpu.memory_space<vmem>>, vector<1x128x128xbf16>
      %46 = vector.shape_cast %45 : vector<1x128x128xbf16> to vector<128x128xbf16>
      %cst_44 = arith.constant dense<0.000000e+00> : vector<8x128xf32>
      %47 = tpu.matmul %44, %46, %cst_44 {dimension_numbers = #tpu.dot_dimension_numbers<[1], [0], [0], [1], [0, 0, 1, 1], [], []>} : vector<8x128xbf16>, vector<128x128xbf16>, vector<8x128xf32> -> vector<8x128xf32>
      %c0_45 = arith.constant 0 : index
      %c0_46 = arith.constant 0 : index
      %c0_47 = arith.constant 0 : index
      %48 = vector.load %arg8[%c0_45, %c0_46, %c0_47] : memref<3x1x128xf32, #tpu.memory_space<vmem>>, vector<1x1x128xf32>
      %49 = vector.shape_cast %48 : vector<1x1x128xf32> to vector<1x128xf32>
      %50 = vector.broadcast %49 : vector<1x128xf32> to vector<8x128xf32>
      %51 = arith.addf %47, %50 : vector<8x128xf32>
      %cst_48 = arith.constant 0.000000e+00 : f32
      %52 = vector.broadcast %cst_48 : f32 to vector<8x128xf32>
      %53 = arith.maximumf %51, %52 : vector<8x128xf32>
      %c1_49 = arith.constant 1 : index
      %c0_50 = arith.constant 0 : index
      %c0_51 = arith.constant 0 : index
      %54 = vector.load %arg12[%c1_49, %c0_50, %c0_51] : memref<3x8x128xf32, #tpu.memory_space<vmem>>, vector<1x8x128xf32>
      %55 = vector.shape_cast %54 : vector<1x8x128xf32> to vector<8x128xf32>
      %c1_52 = arith.constant 1 : index
      %c0_53 = arith.constant 0 : index
      %c0_54 = arith.constant 0 : index
      %56 = vector.load %arg6[%c1_52, %c0_53, %c0_54] : memref<3x1x128xf32, #tpu.memory_space<vmem>>, vector<1x1x128xf32>
      %57 = vector.shape_cast %56 : vector<1x1x128xf32> to vector<1x128xf32>
      %58 = vector.broadcast %57 : vector<1x128xf32> to vector<8x128xf32>
      %59 = arith.addf %55, %58 : vector<8x128xf32>
      %cst_55 = arith.constant 0.000000e+00 : f32
      %60 = vector.broadcast %cst_55 : f32 to vector<8x128xf32>
      %61 = arith.maximumf %59, %60 : vector<8x128xf32>
      %62 = arith.truncf %61 : vector<8x128xf32> to vector<8x128xbf16>
      %c1_56 = arith.constant 1 : index
      %c0_57 = arith.constant 0 : index
      %c0_58 = arith.constant 0 : index
      %63 = vector.load %arg7[%c1_56, %c0_57, %c0_58] : memref<3x128x128xbf16, #tpu.memory_space<vmem>>, vector<1x128x128xbf16>
      %64 = vector.shape_cast %63 : vector<1x128x128xbf16> to vector<128x128xbf16>
      %cst_59 = arith.constant dense<0.000000e+00> : vector<8x128xf32>
      %65 = tpu.matmul %62, %64, %cst_59 {dimension_numbers = #tpu.dot_dimension_numbers<[1], [0], [0], [1], [0, 0, 1, 1], [], []>} : vector<8x128xbf16>, vector<128x128xbf16>, vector<8x128xf32> -> vector<8x128xf32>
      %c1_60 = arith.constant 1 : index
      %c0_61 = arith.constant 0 : index
      %c0_62 = arith.constant 0 : index
      %66 = vector.load %arg8[%c1_60, %c0_61, %c0_62] : memref<3x1x128xf32, #tpu.memory_space<vmem>>, vector<1x1x128xf32>
      %67 = vector.shape_cast %66 : vector<1x1x128xf32> to vector<1x128xf32>
      %68 = vector.broadcast %67 : vector<1x128xf32> to vector<8x128xf32>
      %69 = arith.addf %65, %68 : vector<8x128xf32>
      %cst_63 = arith.constant 0.000000e+00 : f32
      %70 = vector.broadcast %cst_63 : f32 to vector<8x128xf32>
      %71 = arith.maximumf %69, %70 : vector<8x128xf32>
      %c2_64 = arith.constant 2 : index
      %c0_65 = arith.constant 0 : index
      %c0_66 = arith.constant 0 : index
      %72 = vector.load %arg12[%c2_64, %c0_65, %c0_66] : memref<3x8x128xf32, #tpu.memory_space<vmem>>, vector<1x8x128xf32>
      %73 = vector.shape_cast %72 : vector<1x8x128xf32> to vector<8x128xf32>
      %c2_67 = arith.constant 2 : index
      %c0_68 = arith.constant 0 : index
      %c0_69 = arith.constant 0 : index
      %74 = vector.load %arg6[%c2_67, %c0_68, %c0_69] : memref<3x1x128xf32, #tpu.memory_space<vmem>>, vector<1x1x128xf32>
      %75 = vector.shape_cast %74 : vector<1x1x128xf32> to vector<1x128xf32>
      %76 = vector.broadcast %75 : vector<1x128xf32> to vector<8x128xf32>
      %77 = arith.addf %73, %76 : vector<8x128xf32>
      %cst_70 = arith.constant 0.000000e+00 : f32
      %78 = vector.broadcast %cst_70 : f32 to vector<8x128xf32>
      %79 = arith.maximumf %77, %78 : vector<8x128xf32>
      %80 = arith.truncf %79 : vector<8x128xf32> to vector<8x128xbf16>
      %c2_71 = arith.constant 2 : index
      %c0_72 = arith.constant 0 : index
      %c0_73 = arith.constant 0 : index
      %81 = vector.load %arg7[%c2_71, %c0_72, %c0_73] : memref<3x128x128xbf16, #tpu.memory_space<vmem>>, vector<1x128x128xbf16>
      %82 = vector.shape_cast %81 : vector<1x128x128xbf16> to vector<128x128xbf16>
      %cst_74 = arith.constant dense<0.000000e+00> : vector<8x128xf32>
      %83 = tpu.matmul %80, %82, %cst_74 {dimension_numbers = #tpu.dot_dimension_numbers<[1], [0], [0], [1], [0, 0, 1, 1], [], []>} : vector<8x128xbf16>, vector<128x128xbf16>, vector<8x128xf32> -> vector<8x128xf32>
      %c2_75 = arith.constant 2 : index
      %c0_76 = arith.constant 0 : index
      %c0_77 = arith.constant 0 : index
      %84 = vector.load %arg8[%c2_75, %c0_76, %c0_77] : memref<3x1x128xf32, #tpu.memory_space<vmem>>, vector<1x1x128xf32>
      %85 = vector.shape_cast %84 : vector<1x1x128xf32> to vector<1x128xf32>
      %86 = vector.broadcast %85 : vector<1x128xf32> to vector<8x128xf32>
      %87 = arith.addf %83, %86 : vector<8x128xf32>
      %cst_78 = arith.constant 0.000000e+00 : f32
      %88 = vector.broadcast %cst_78 : f32 to vector<8x128xf32>
      %89 = arith.maximumf %87, %88 : vector<8x128xf32>
      %90 = arith.subf %53, %71 : vector<8x128xf32>
      %91 = arith.mulf %90, %90 : vector<8x128xf32>
      %cst_79 = arith.constant dense<0.000000e+00> : vector<8xf32>
      %92 = vector.multi_reduction <add>, %91, %cst_79 [1] : vector<8x128xf32> to vector<8xf32>
      %93 = vector.shape_cast %92 : vector<8xf32> to vector<8x1xf32>
      %94 = math.sqrt %93 : vector<8x1xf32>
      %95 = arith.subf %53, %89 : vector<8x128xf32>
      %96 = arith.mulf %95, %95 : vector<8x128xf32>
      %cst_80 = arith.constant dense<0.000000e+00> : vector<8xf32>
      %97 = vector.multi_reduction <add>, %96, %cst_80 [1] : vector<8x128xf32> to vector<8xf32>
      %98 = vector.shape_cast %97 : vector<8xf32> to vector<8x1xf32>
      %99 = math.sqrt %98 : vector<8x1xf32>
      %100 = arith.subf %71, %89 : vector<8x128xf32>
      %101 = arith.mulf %100, %100 : vector<8x128xf32>
      %cst_81 = arith.constant dense<0.000000e+00> : vector<8xf32>
      %102 = vector.multi_reduction <add>, %101, %cst_81 [1] : vector<8x128xf32> to vector<8xf32>
      %103 = vector.shape_cast %102 : vector<8xf32> to vector<8x1xf32>
      %104 = math.sqrt %103 : vector<8x1xf32>
      %105 = arith.addf %94, %99 : vector<8x1xf32>
      %106 = arith.addf %94, %104 : vector<8x1xf32>
      %107 = arith.addf %99, %104 : vector<8x1xf32>
      %108 = arith.addf %105, %106 : vector<8x1xf32>
      %109 = arith.addf %108, %107 : vector<8x1xf32>
      %cst_82 = arith.constant 1.000000e-10 : f32
      %110 = vector.broadcast %cst_82 : f32 to vector<8x1xf32>
      %111 = arith.addf %109, %110 : vector<8x1xf32>
      %112 = tpu.reciprocal %111 {approx = true} : vector<8x1xf32> -> vector<8x1xf32>
      %113 = arith.mulf %105, %112 : vector<8x1xf32>
      %114 = vector.broadcast %113 : vector<8x1xf32> to vector<8x128xf32>
      %115 = arith.mulf %114, %53 : vector<8x128xf32>
      %116 = arith.mulf %106, %112 : vector<8x1xf32>
      %117 = vector.broadcast %116 : vector<8x1xf32> to vector<8x128xf32>
      %118 = arith.mulf %117, %71 : vector<8x128xf32>
      %119 = arith.addf %115, %118 : vector<8x128xf32>
      %120 = arith.mulf %107, %112 : vector<8x1xf32>
      %121 = vector.broadcast %120 : vector<8x1xf32> to vector<8x128xf32>
      %122 = arith.mulf %121, %89 : vector<8x128xf32>
      %123 = arith.addf %119, %122 : vector<8x128xf32>
      %124 = arith.truncf %123 : vector<8x128xf32> to vector<8x128xbf16>
      %c0_83 = arith.constant 0 : index
      %c0_84 = arith.constant 0 : index
      %125 = vector.load %arg9[%c0_83, %c0_84] : memref<128x128xbf16, #tpu.memory_space<vmem>>, vector<128x128xbf16>
      %cst_85 = arith.constant dense<0.000000e+00> : vector<8x128xf32>
      %126 = tpu.matmul %124, %125, %cst_85 {dimension_numbers = #tpu.dot_dimension_numbers<[1], [0], [0], [1], [0, 0, 1, 1], [], []>} : vector<8x128xbf16>, vector<128x128xbf16>, vector<8x128xf32> -> vector<8x128xf32>
      %c0_86 = arith.constant 0 : index
      %c0_87 = arith.constant 0 : index
      %127 = vector.load %arg10[%c0_86, %c0_87] : memref<1x128xf32, #tpu.memory_space<vmem>>, vector<1x128xf32>
      %128 = vector.broadcast %127 : vector<1x128xf32> to vector<8x128xf32>
      %129 = arith.addf %126, %128 : vector<8x128xf32>
      %cst_88 = arith.constant 0.000000e+00 : f32
      %130 = vector.broadcast %cst_88 : f32 to vector<8x128xf32>
      %131 = arith.maximumf %129, %130 : vector<8x128xf32>
      %c0_89 = arith.constant 0 : index
      %c0_90 = arith.constant 0 : index
      %132 = vector.load %arg11[%c0_89, %c0_90] : memref<8x128xf32, #tpu.memory_space<vmem>>, vector<8x128xf32>
      tpu.vector_store %arg11[%c0_89, %c0_90], %131 {strides = array<i32>} : memref<8x128xf32, #tpu.memory_space<vmem>>, vector<8x128xf32>,
    } else {
    }
    return
  }
  func.func @transform_0(%arg0: i32, %arg1: i32) -> (i32, i32) {
    %c0_i32 = arith.constant 0 : i32
    %0 = arith.addi %c0_i32, %arg1 : i32
    %c0_i32_0 = arith.constant 0 : i32
    return %arg0, %0 : i32, i32
  }
  func.func @transform_1(%arg0: i32, %arg1: i32) -> (i32, i32) {
    %c3_i32 = arith.constant 3 : i32
    %0 = arith.addi %c3_i32, %arg1 : i32
    %c0_i32 = arith.constant 0 : i32
    return %arg0, %0 : i32, i32
  }
  func.func @transform_2(%arg0: i32, %arg1: i32) -> (i32, i32) {
    %c6_i32 = arith.constant 6 : i32
    %0 = arith.addi %c6_i32, %arg1 : i32
    %c0_i32 = arith.constant 0 : i32
    return %arg0, %0 : i32, i32
  }
  func.func @transform_3(%arg0: i32, %arg1: i32) -> (i32, i32, i32) {
    %c0_i32 = arith.constant 0 : i32
    %c0_i32_0 = arith.constant 0 : i32
    %c0_i32_1 = arith.constant 0 : i32
    return %c0_i32, %arg1, %c0_i32_0 : i32, i32, i32
  }
  func.func @transform_4(%arg0: i32, %arg1: i32) -> (i32, i32, i32) {
    %c0_i32 = arith.constant 0 : i32
    %c0_i32_0 = arith.constant 0 : i32
    %c0_i32_1 = arith.constant 0 : i32
    %c0_i32_2 = arith.constant 0 : i32
    return %c0_i32, %c0_i32_0, %c0_i32_1 : i32, i32, i32
  }
  func.func @transform_5(%arg0: i32, %arg1: i32) -> (i32, i32, i32) {
    %c0_i32 = arith.constant 0 : i32
    %c0_i32_0 = arith.constant 0 : i32
    %c0_i32_1 = arith.constant 0 : i32
    %c0_i32_2 = arith.constant 0 : i32
    return %c0_i32, %c0_i32_0, %c0_i32_1 : i32, i32, i32
  }
  func.func @transform_6(%arg0: i32, %arg1: i32) -> (i32, i32, i32) {
    %c0_i32 = arith.constant 0 : i32
    %c0_i32_0 = arith.constant 0 : i32
    %c0_i32_1 = arith.constant 0 : i32
    %c0_i32_2 = arith.constant 0 : i32
    return %c0_i32, %c0_i32_0, %c0_i32_1 : i32, i32, i32
  }
  func.func @transform_7(%arg0: i32, %arg1: i32) -> (i32, i32) {
    %c0_i32 = arith.constant 0 : i32
    %c0_i32_0 = arith.constant 0 : i32
    %c0_i32_1 = arith.constant 0 : i32
    return %c0_i32, %c0_i32_0 : i32, i32
  }
  func.func @transform_8(%arg0: i32, %arg1: i32) -> (i32, i32) {
    %c0_i32 = arith.constant 0 : i32
    %c0_i32_0 = arith.constant 0 : i32
    %c0_i32_1 = arith.constant 0 : i32
    return %c0_i32, %c0_i32_0 : i32, i32
  }
  func.func @transform_9(%arg0: i32, %arg1: i32) -> (i32, i32) {
    %c0_i32 = arith.constant 0 : i32
    %c0_i32_0 = arith.constant 0 : i32
    return %arg0, %c0_i32 : i32, i32
  }
}

</mosaic_0001>

<llo_original>
// kernel: resnet_cnn_ex_forward.1
$region0: #{resnet_cnn_ex_forward.1}
  #allocation0 [shape = 'u32[]', space=smem, size = 0x4, offset = 0x4, fixed_abs, tag = 'smem constant byte address 0x4 - core index']
  #allocation1 [shape = 'u32[72,128]{1,0:T(1,128)}', space=vmem, size = 0x9000, scoped, tag = 'internal scratch']
  #allocation2 [shape = 'f32[3,8,128]{2,1,0:T(8,128)}', space=vmem, size = 0x3000, scoped, tag = 'scratch operand']
  %s0 = inlined_call_operand.vmem [shape: bf16[8,2304], index: 0, kind: input, shape index: {}, may-alias: {0,1,2}]
  %s1 = inlined_call_operand.vmem [shape: bf16[8,2304], index: 1, kind: input, shape index: {}, may-alias: {0,1,2}]
  %s2 = inlined_call_operand.vmem [shape: bf16[8,2304], index: 2, kind: input, shape index: {}, may-alias: {0,1,2}]
  %s3 = inlined_call_operand.vmem [shape: bf16[3,768,128], index: 3, kind: input, shape index: {}]
  %s4 = inlined_call_operand.vmem [shape: f32[3,1,128], index: 4, kind: input, shape index: {}]
  %s5 = inlined_call_operand.vmem [shape: bf16[3,128,128], index: 5, kind: input, shape index: {}]
  %s6 = inlined_call_operand.vmem [shape: f32[3,1,128], index: 6, kind: input, shape index: {}]
  %s7 = inlined_call_operand.vmem [shape: bf16[128,128], index: 7, kind: input, shape index: {}]
  %s8 = inlined_call_operand.vmem [shape: f32[1,128], index: 8, kind: input, shape index: {}]
  %s9 = inlined_call_operand.vmem [shape: f32[8,128], index: 9, kind: output, shape index: {}]
  %s10 = sld [smem:[#allocation0]]
  $region118: #{resnet_cnn_ex_forward.1} parent=0
    _
  %s12 = ssub.s32 1, %s10
  %s13 = scalar_select 0, %s12, %s10
  $region1: #{resnet_cnn_ex_forward.1} parent=0
    #allocation3 [shape = 'u8[393216]{0}', space=vmem, size = 0x60000, scoped, tag = 'input window, operand 3']
    loop: start=0, step=1, limit=5
    $region2: #{resnet_cnn_ex_forward.1} parent=1 // loop_pre_header
      _
    $region3: #{resnet_cnn_ex_forward.1} parent=1 // loop_header
      %s15 = sphi 0, %s19
      %p16 = scmp.ge.s32.totalorder %s15, 5
      %s22 = sphi 0, %s34
      %s23 = sphi 0, %s30
      %s24 = sphi 0, %s22
      %s25 = sphi 0, %s23
      %s26 = sphi 0, %s24
      %s27 = sphi 0, %s25
      %s39 = sphi 0, %s41
      %s42 = sphi 0, %s39
      %s43 = sphi 0, %s42
      %s59 = sphi 0, %s43
      %s69 = sphi 0, %s71
      %s72 = sphi 0, %s69
      %s73 = sphi 0, %s72
      %s89 = sphi 0, %s73
      %s99 = sphi 0, %s101
      %s102 = sphi 0, %s99
      %s103 = sphi 0, %s102
      %s119 = sphi 0, %s103
      %s125 = sphi 0, %s127
      %s128 = sphi 0, %s125
      %s129 = sphi 0, %s128
      %s145 = sphi 0, %s129
      %s149 = sphi 0, %s149
      %s151 = sphi 0, %s149
      %s152 = sphi 0, %s151
      %s166 = sphi 0, %s152
      %s170 = sphi 0, %s170
      %s172 = sphi 0, %s170
      %s173 = sphi 0, %s172
      %s187 = sphi 0, %s173
      %s191 = sphi 0, %s191
      %s193 = sphi 0, %s191
      %s194 = sphi 0, %s193
      %s208 = sphi 0, %s194
      %s212 = sphi 0, %s212
      %s214 = sphi 0, %s212
      %s215 = sphi 0, %s214
      %s229 = sphi 0, %s215
      %s233 = sphi 0, %s233
      %s235 = sphi 0, %s233
      %s236 = sphi 0, %s235
      %s250 = sphi 0, %s236
      %s256 = sphi 0, %s258
      %s259 = sphi 0, %s256
      %s260 = sphi 0, %s259
      %s276 = sphi 0, %s260
    $region4: #{resnet_cnn_ex_forward.1} parent=1 // loop_header_branch
      %18 = sbr.rel (%p16) target = $region8
    $region5: #{resnet_cnn_ex_forward.1} parent=1 // loop_body
      %s20 = ssub.s32 %s15, 1
      %s21 = ssub.s32 %s15, 2
      %s28 = sadd.s32 1, %s23
      %p29 = scmp.ge.s32.totalorder %s28, 3
      %s30 = scalar_select %p29, 0, %s28
      %s31 = sadd.s32 1, %s22
      %s32 = scalar_select %p29, %s31, %s22
      %p33 = scmp.ge.s32.totalorder %s32, 1
      %s34 = scalar_select %p33, 0, %s32
      %s35 = ssub.s32 %s22, %s34
      %s36 = ssub.s32 %s23, %s30
      %s37 = sor.u32 %s35, %s36
      %p38 = scmp.eq.s32.totalorder %s37, 0
      %s40 = sadd.s32 %s39, 1
      %s41 = scalar_select %p38, %s39, %s40
      %p44 = pneg %p38
      %p45 = scmp.eq.s32.totalorder %s15, 2
      %p46 = por %p44, %p45
      %p47 = scmp.ne.s32.totalorder %s39, %s42
      %p48 = scmp.eq.s32.totalorder %s15, 0
      %p49 = por %p47, %p48
      %p50 = scmp.ne.s32.totalorder %s39, %s42
      %p51 = scmp.eq.s32.totalorder %s20, 2
      %p52 = por %p50, %p51
      %p53 = scmp.ne.s32.totalorder %s42, %s43
      %p54 = scmp.eq.s32.totalorder %s20, 0
      %p55 = por %p53, %p54
      %p56 = scmp.ne.s32.totalorder %s42, %s43
      %p57 = scmp.eq.s32.totalorder %s21, 2
      %p58 = por %p56, %p57
      %p60 = scmp.ne.s32.totalorder %s43, %s59
      %p61 = scmp.eq.s32.totalorder %s21, 0
      %p62 = por %p60, %p61
      %s63 = sadd.s32 %s23, 3
      %s64 = sadd.s32 %s30, 3
      %s65 = ssub.s32 %s22, %s34
      %s66 = ssub.s32 %s63, %s64
      %s67 = sor.u32 %s65, %s66
      %p68 = scmp.eq.s32.totalorder %s67, 0
      %s70 = sadd.s32 %s69, 1
      %s71 = scalar_select %p68, %s69, %s70
      %p74 = pneg %p68
      %p75 = scmp.eq.s32.totalorder %s15, 2
      %p76 = por %p74, %p75
      %p77 = scmp.ne.s32.totalorder %s69, %s72
      %p78 = scmp.eq.s32.totalorder %s15, 0
      %p79 = por %p77, %p78
      %p80 = scmp.ne.s32.totalorder %s69, %s72
      %p81 = scmp.eq.s32.totalorder %s20, 2
      %p82 = por %p80, %p81
      %p83 = scmp.ne.s32.totalorder %s72, %s73
      %p84 = scmp.eq.s32.totalorder %s20, 0
      %p85 = por %p83, %p84
      %p86 = scmp.ne.s32.totalorder %s72, %s73
      %p87 = scmp.eq.s32.totalorder %s21, 2
      %p88 = por %p86, %p87
      %p90 = scmp.ne.s32.totalorder %s73, %s89
      %p91 = scmp.eq.s32.totalorder %s21, 0
      %p92 = por %p90, %p91
      %s93 = sadd.s32 %s23, 6
      %s94 = sadd.s32 %s30, 6
      %s95 = ssub.s32 %s22, %s34
      %s96 = ssub.s32 %s93, %s94
      %s97 = sor.u32 %s95, %s96
      %p98 = scmp.eq.s32.totalorder %s97, 0
      %s100 = sadd.s32 %s99, 1
      %s101 = scalar_select %p98, %s99, %s100
      %p104 = pneg %p98
      %p105 = scmp.eq.s32.totalorder %s15, 2
      %p106 = por %p104, %p105
      %p107 = scmp.ne.s32.totalorder %s99, %s102
      %p108 = scmp.eq.s32.totalorder %s15, 0
      %p109 = por %p107, %p108
      %p110 = scmp.ne.s32.totalorder %s99, %s102
      %p111 = scmp.eq.s32.totalorder %s20, 2
      %p112 = por %p110, %p111
      %p113 = scmp.ne.s32.totalorder %s102, %s103
      %p114 = scmp.eq.s32.totalorder %s20, 0
      %p115 = por %p113, %p114
      %p116 = scmp.ne.s32.totalorder %s102, %s103
      %p117 = scmp.eq.s32.totalorder %s21, 2
      %p118 = por %p116, %p117
      %p120 = scmp.ne.s32.totalorder %s103, %s119
      %p121 = scmp.eq.s32.totalorder %s21, 0
      %p122 = por %p120, %p121
      %s123 = ssub.s32 %s23, %s30
      %p124 = scmp.eq.s32.totalorder %s123, 0
      %s126 = sadd.s32 %s125, 1
      %s127 = scalar_select %p124, %s125, %s126
      %p130 = pneg %p124
      %p131 = scmp.eq.s32.totalorder %s15, 2
      %p132 = por %p130, %p131
      %p133 = scmp.ne.s32.totalorder %s125, %s128
      %p134 = scmp.eq.s32.totalorder %s15, 0
      %p135 = por %p133, %p134
      %p136 = scmp.ne.s32.totalorder %s125, %s128
      %p137 = scmp.eq.s32.totalorder %s20, 2
      %p138 = por %p136, %p137
      %p139 = scmp.ne.s32.totalorder %s128, %s129
      %p140 = scmp.eq.s32.totalorder %s20, 0
      %p141 = por %p139, %p140
      %p142 = scmp.ne.s32.totalorder %s128, %s129
      %p143 = scmp.eq.s32.totalorder %s21, 2
      %p144 = por %p142, %p143
      %p146 = scmp.ne.s32.totalorder %s129, %s145
      %p147 = scmp.eq.s32.totalorder %s21, 0
      %p148 = por %p146, %p147
      %s150 = sadd.s32 %s149, 1
      %p153 = scmp.eq.s32.totalorder %s15, 2
      %p154 = scmp.ne.s32.totalorder %s149, %s151
      %p155 = scmp.eq.s32.totalorder %s15, 0
      %p156 = por %p154, %p155
      %p157 = scmp.ne.s32.totalorder %s149, %s151
      %p158 = scmp.eq.s32.totalorder %s20, 2
      %p159 = por %p157, %p158
      %p160 = scmp.ne.s32.totalorder %s151, %s152
      %p161 = scmp.eq.s32.totalorder %s20, 0
      %p162 = por %p160, %p161
      %p163 = scmp.ne.s32.totalorder %s151, %s152
      %p164 = scmp.eq.s32.totalorder %s21, 2
      %p165 = por %p163, %p164
      %p167 = scmp.ne.s32.totalorder %s152, %s166
      %p168 = scmp.eq.s32.totalorder %s21, 0
      %p169 = por %p167, %p168
      %s171 = sadd.s32 %s170, 1
      %p174 = scmp.eq.s32.totalorder %s15, 2
      %p175 = scmp.ne.s32.totalorder %s170, %s172
      %p176 = scmp.eq.s32.totalorder %s15, 0
      %p177 = por %p175, %p176
      %p178 = scmp.ne.s32.totalorder %s170, %s172
      %p179 = scmp.eq.s32.totalorder %s20, 2
      %p180 = por %p178, %p179
      %p181 = scmp.ne.s32.totalorder %s172, %s173
      %p182 = scmp.eq.s32.totalorder %s20, 0
      %p183 = por %p181, %p182
      %p184 = scmp.ne.s32.totalorder %s172, %s173
      %p185 = scmp.eq.s32.totalorder %s21, 2
      %p186 = por %p184, %p185
      %p188 = scmp.ne.s32.totalorder %s173, %s187
      %p189 = scmp.eq.s32.totalorder %s21, 0
      %p190 = por %p188, %p189
      %s192 = sadd.s32 %s191, 1
      %p195 = scmp.eq.s32.totalorder %s15, 2
      %p196 = scmp.ne.s32.totalorder %s191, %s193
      %p197 = scmp.eq.s32.totalorder %s15, 0
      %p198 = por %p196, %p197
      %p199 = scmp.ne.s32.totalorder %s191, %s193
      %p200 = scmp.eq.s32.totalorder %s20, 2
      %p201 = por %p199, %p200
      %p202 = scmp.ne.s32.totalorder %s193, %s194
      %p203 = scmp.eq.s32.totalorder %s20, 0
      %p204 = por %p202, %p203
      %p205 = scmp.ne.s32.totalorder %s193, %s194
      %p206 = scmp.eq.s32.totalorder %s21, 2
      %p207 = por %p205, %p206
      %p209 = scmp.ne.s32.totalorder %s194, %s208
      %p210 = scmp.eq.s32.totalorder %s21, 0
      %p211 = por %p209, %p210
      %s213 = sadd.s32 %s212, 1
      %p216 = scmp.eq.s32.totalorder %s15, 2
      %p217 = scmp.ne.s32.totalorder %s212, %s214
      %p218 = scmp.eq.s32.totalorder %s15, 0
      %p219 = por %p217, %p218
      %p220 = scmp.ne.s32.totalorder %s212, %s214
      %p221 = scmp.eq.s32.totalorder %s20, 2
      %p222 = por %p220, %p221
      %p223 = scmp.ne.s32.totalorder %s214, %s215
      %p224 = scmp.eq.s32.totalorder %s20, 0
      %p225 = por %p223, %p224
      %p226 = scmp.ne.s32.totalorder %s214, %s215
      %p227 = scmp.eq.s32.totalorder %s21, 2
      %p228 = por %p226, %p227
      %p230 = scmp.ne.s32.totalorder %s215, %s229
      %p231 = scmp.eq.s32.totalorder %s21, 0
      %p232 = por %p230, %p231
      %s234 = sadd.s32 %s233, 1
      %p237 = scmp.eq.s32.totalorder %s15, 2
      %p238 = scmp.ne.s32.totalorder %s233, %s235
      %p239 = scmp.eq.s32.totalorder %s15, 0
      %p240 = por %p238, %p239
      %p241 = scmp.ne.s32.totalorder %s233, %s235
      %p242 = scmp.eq.s32.totalorder %s20, 2
      %p243 = por %p241, %p242
      %p244 = scmp.ne.s32.totalorder %s235, %s236
      %p245 = scmp.eq.s32.totalorder %s20, 0
      %p246 = por %p244, %p245
      %p247 = scmp.ne.s32.totalorder %s235, %s236
      %p248 = scmp.eq.s32.totalorder %s21, 2
      %p249 = por %p247, %p248
      %p251 = scmp.ne.s32.totalorder %s236, %s250
      %p252 = scmp.eq.s32.totalorder %s21, 0
      %p253 = por %p251, %p252
      %s254 = ssub.s32 %s22, %s34
      %p255 = scmp.eq.s32.totalorder %s254, 0
      %s257 = sadd.s32 %s256, 1
      %s258 = scalar_select %p255, %s256, %s257
      %p261 = pneg %p255
      %p262 = scmp.eq.s32.totalorder %s15, 2
      %p263 = por %p261, %p262
      %p264 = scmp.ne.s32.totalorder %s256, %s259
      %p265 = scmp.eq.s32.totalorder %s15, 0
      %p266 = por %p264, %p265
      %p267 = scmp.ne.s32.totalorder %s256, %s259
      %p268 = scmp.eq.s32.totalorder %s20, 2
      %p269 = por %p267, %p268
      %p270 = scmp.ne.s32.totalorder %s259, %s260
      %p271 = scmp.eq.s32.totalorder %s20, 0
      %p272 = por %p270, %p271
      %p273 = scmp.ne.s32.totalorder %s259, %s260
      %p274 = scmp.eq.s32.totalorder %s21, 2
      %p275 = por %p273, %p274
      %p277 = scmp.ne.s32.totalorder %s260, %s276
      %p278 = scmp.eq.s32.totalorder %s21, 0
      %p279 = por %p277, %p278
      %p280 = scmp.le.s32.totalorder 1, %s15
      %p281 = scmp.lt.s32.totalorder %s15, 4
      %p282 = pnand %p280, %p281
      %p283 = pneg %p282
      // Predicated region
      $region9: #{resnet_cnn_ex_forward.1} parent=5 // pred_check
        _
      $region10: #{resnet_cnn_ex_forward.1} parent=5 // pred_check_branch
        %285 = sbr.rel (%p282) target = $region12
      $region11: #{resnet_cnn_ex_forward.1} parent=5 // pred_region
        %s286 = ssub.s32 %s15, 1
        // Predicated region
        $region13: #{resnet_cnn_ex_forward.1} parent=11 // pred_check
          %p287 = pneg %p162
        $region14: #{resnet_cnn_ex_forward.1} parent=11 // pred_check_branch
          %289 = sbr.rel (%p287) target = $region16
        $region15: #{resnet_cnn_ex_forward.1} parent=11 // pred_region
          _
        $region16: #{resnet_cnn_ex_forward.1} parent=11 // pred_fallthru
          _
        // Predicated region
        $region17: #{resnet_cnn_ex_forward.1} parent=11 // pred_check
          %p290 = pneg %p183
        $region18: #{resnet_cnn_ex_forward.1} parent=11 // pred_check_branch
          %292 = sbr.rel (%p290) target = $region20
        $region19: #{resnet_cnn_ex_forward.1} parent=11 // pred_region
          _
        $region20: #{resnet_cnn_ex_forward.1} parent=11 // pred_fallthru
          _
        // Predicated region
        $region21: #{resnet_cnn_ex_forward.1} parent=11 // pred_check
          %p293 = pneg %p204
        $region22: #{resnet_cnn_ex_forward.1} parent=11 // pred_check_branch
          %295 = sbr.rel (%p293) target = $region24
        $region23: #{resnet_cnn_ex_forward.1} parent=11 // pred_region
          _
        $region24: #{resnet_cnn_ex_forward.1} parent=11 // pred_fallthru
          _
        // Predicated region
        $region25: #{resnet_cnn_ex_forward.1} parent=11 // pred_check
          %p296 = pneg %p225
        $region26: #{resnet_cnn_ex_forward.1} parent=11 // pred_check_branch
          %298 = sbr.rel (%p296) target = $region28
        $region27: #{resnet_cnn_ex_forward.1} parent=11 // pred_region
          _
        $region28: #{resnet_cnn_ex_forward.1} parent=11 // pred_fallthru
          _
        // Predicated region
        $region29: #{resnet_cnn_ex_forward.1} parent=11 // pred_check
          %p299 = pneg %p246
        $region30: #{resnet_cnn_ex_forward.1} parent=11 // pred_check_branch
          %301 = sbr.rel (%p299) target = $region32
        $region31: #{resnet_cnn_ex_forward.1} parent=11 // pred_region
          _
        $region32: #{resnet_cnn_ex_forward.1} parent=11 // pred_fallthru
          _
      $region12: #{resnet_cnn_ex_forward.1} parent=5 // pred_fallthru
        _
      %p302 = scmp.lt.s32.totalorder %s15, 3
      // Predicated region
      $region33: #{resnet_cnn_ex_forward.1} parent=5 // pred_check
        %p303 = pneg %p302
      $region34: #{resnet_cnn_ex_forward.1} parent=5 // pred_check_branch
        %305 = sbr.rel (%p303) target = $region36
      $region35: #{resnet_cnn_ex_forward.1} parent=5 // pred_region
        // Predicated region
        $region37: #{resnet_cnn_ex_forward.1} parent=35 // pred_check
          %p306 = pneg %p49
        $region38: #{resnet_cnn_ex_forward.1} parent=35 // pred_check_branch
          %308 = sbr.rel (%p306) target = $region40
        $region39: #{resnet_cnn_ex_forward.1} parent=35 // pred_region
          %s309 = smul.u32 2, %s23
          %p310 = scmp.lt.s32.totalorder %s22, 0
          %s311 = scalar_select %p310, %s22, 0
          %p312 = scmp.lt.s32.totalorder %s309, 17
          %s313 = scalar_select %p312, %s309, 17
          %s314 = smul.addr %s311, 18
          %s315 = sadd.s32 %s313, %s314
          %s316 = smul.addr %s315, 4
          %s317 = scalar_lea.vmem %s0, %s316
          %s318 = smul.u32 2, %s23
        $region40: #{resnet_cnn_ex_forward.1} parent=35 // pred_fallthru
          _
        // Predicated region
        $region41: #{resnet_cnn_ex_forward.1} parent=35 // pred_check
          %p319 = pneg %p79
        $region42: #{resnet_cnn_ex_forward.1} parent=35 // pred_check_branch
          %321 = sbr.rel (%p319) target = $region44
        $region43: #{resnet_cnn_ex_forward.1} parent=35 // pred_region
          %s322 = sadd.s32 %s23, 3
          %s323 = smul.u32 2, %s322
          %p324 = scmp.lt.s32.totalorder %s22, 0
          %s325 = scalar_select %p324, %s22, 0
          %p326 = scmp.lt.s32.totalorder %s323, 17
          %s327 = scalar_select %p326, %s323, 17
          %s328 = smul.addr %s325, 18
          %s329 = sadd.s32 %s327, %s328
          %s330 = smul.addr %s329, 4
          %s331 = scalar_lea.vmem %s1, %s330
          %s332 = sadd.s32 %s23, 3
          %s333 = smul.u32 2, %s332
        $region44: #{resnet_cnn_ex_forward.1} parent=35 // pred_fallthru
          _
        // Predicated region
        $region45: #{resnet_cnn_ex_forward.1} parent=35 // pred_check
          %p334 = pneg %p109
        $region46: #{resnet_cnn_ex_forward.1} parent=35 // pred_check_branch
          %336 = sbr.rel (%p334) target = $region48
        $region47: #{resnet_cnn_ex_forward.1} parent=35 // pred_region
          %s337 = sadd.s32 %s23, 6
          %s338 = smul.u32 2, %s337
          %p339 = scmp.lt.s32.totalorder %s22, 0
          %s340 = scalar_select %p339, %s22, 0
          %p341 = scmp.lt.s32.totalorder %s338, 17
          %s342 = scalar_select %p341, %s338, 17
          %s343 = smul.addr %s340, 18
          %s344 = sadd.s32 %s342, %s343
          %s345 = smul.addr %s344, 4
          %s346 = scalar_lea.vmem %s2, %s345
          %s347 = sadd.s32 %s23, 6
          %s348 = smul.u32 2, %s347
        $region48: #{resnet_cnn_ex_forward.1} parent=35 // pred_fallthru
          _
        // Predicated region
        $region49: #{resnet_cnn_ex_forward.1} parent=35 // pred_check
          %p349 = pneg %p135
        $region50: #{resnet_cnn_ex_forward.1} parent=35 // pred_check_branch
          %351 = sbr.rel (%p349) target = $region52
        $region51: #{resnet_cnn_ex_forward.1} parent=35 // pred_region
          %s352 = sand.u32 %s125, 1
          %s353 = sand.u32 %s125, 1
          %s354 = smul.addr %s353, 384
          %s355 = scalar_lea.vmem [#allocation3], %s354
          %s356 = smul.u32 32, %s23
          %s357 = smul.addr %s356, 4
          %s358 = scalar_lea.vmem %s3, %s357
          // Predicated region
          $region53: #{resnet_cnn_ex_forward.1} parent=51 // pred_check
            _
          $region54: #{resnet_cnn_ex_forward.1} parent=51 // pred_check_branch
            %360 = sbr.rel (0) target = $region56
          $region55: #{resnet_cnn_ex_forward.1} parent=51 // pred_region
            // Predicated region
            $region57: #{resnet_cnn_ex_forward.1} parent=55 // pred_check
              _
            $region58: #{resnet_cnn_ex_forward.1} parent=55 // pred_check_branch
              %362 = sbr.rel target = $region60
            $region59: #{resnet_cnn_ex_forward.1} parent=55 // pred_region
              // Predicated region
              $region72: #{resnet_cnn_ex_forward.1} parent=59 // pred_check
                _
              $region73: #{resnet_cnn_ex_forward.1} parent=59 // pred_check_branch
                %568 = sbr.rel (0) target = $region75
              $region74: #{resnet_cnn_ex_forward.1} parent=59 // pred_region
                loop: start=0, step=1, limit=1
                $region76: #{resnet_cnn_ex_forward.1} parent=74 // loop_pre_header
                  _
                $region77: #{resnet_cnn_ex_forward.1} parent=74 // loop_header
                  %s570 = sphi 0, %s574
                  %p571 = scmp.ge.s32.totalorder %s570, 1
                  %s575 = sphi %s358, %s358
                  %s576 = sphi %s355, %s355
                $region78: #{resnet_cnn_ex_forward.1} parent=74 // loop_header_branch
                  %573 = sbr.rel (%p571) target = $region82
                $region79: #{resnet_cnn_ex_forward.1} parent=74 // loop_body
                  _
                $region80: #{resnet_cnn_ex_forward.1} parent=74 // loop_footer
                  %s574 = sadd.s32 1, %s570
                $region81: #{resnet_cnn_ex_forward.1} parent=74 // loop_footer_branch
                  %569 = sbr.rel target = $region77
                $region82: #{resnet_cnn_ex_forward.1} parent=74 // loop_exit
                  _
                %s578 = ssub.s32 16, 1
                loop: start=0, step=1, limit=1
                $region83: #{resnet_cnn_ex_forward.1} parent=74 // loop_pre_header
                  _
                $region84: #{resnet_cnn_ex_forward.1} parent=74 // loop_header
                  %s580 = sphi 0, %s584
                  %p581 = scmp.ge.s32.totalorder %s580, 1
                  %s585 = sphi %s358, %s358
                  %s586 = sphi %s355, %s355
                $region85: #{resnet_cnn_ex_forward.1} parent=74 // loop_header_branch
                  %583 = sbr.rel (%p581) target = $region89
                $region86: #{resnet_cnn_ex_forward.1} parent=74 // loop_body
                  %v587 = vld [vmem:[%s585] sm:%s578]
                  %588 = vst [vmem:[%s586] sm:%s578] %v587
                  %v589 = vld [vmem:[%s585 + $0x4] sm:%s578]
                  %590 = vst [vmem:[%s586 + $0x4] sm:%s578] %v589
                  %v591 = vld [vmem:[%s585 + $0x8] sm:%s578]
                  %592 = vst [vmem:[%s586 + $0x8] sm:%s578] %v591
                  %v593 = vld [vmem:[%s585 + $0xc] sm:%s578]
                  %594 = vst [vmem:[%s586 + $0xc] sm:%s578] %v593
                  %v595 = vld [vmem:[%s585 + $0x10] sm:%s578]
                  %596 = vst [vmem:[%s586 + $0x10] sm:%s578] %v595
                  %v597 = vld [vmem:[%s585 + $0x14] sm:%s578]
                  %598 = vst [vmem:[%s586 + $0x14] sm:%s578] %v597
                  %v599 = vld [vmem:[%s585 + $0x18] sm:%s578]
                  %600 = vst [vmem:[%s586 + $0x18] sm:%s578] %v599
                  %v601 = vld [vmem:[%s585 + $0x1c] sm:%s578]
                  %602 = vst [vmem:[%s586 + $0x1c] sm:%s578] %v601
                  %v603 = vld [vmem:[%s585 + $0x20] sm:%s578]
                  %604 = vst [vmem:[%s586 + $0x20] sm:%s578] %v603
                  %v605 = vld [vmem:[%s585 + $0x24] sm:%s578]
                  %606 = vst [vmem:[%s586 + $0x24] sm:%s578] %v605
                  %v607 = vld [vmem:[%s585 + $0x28] sm:%s578]
                  %608 = vst [vmem:[%s586 + $0x28] sm:%s578] %v607
                  %v609 = vld [vmem:[%s585 + $0x2c] sm:%s578]
                  %610 = vst [vmem:[%s586 + $0x2c] sm:%s578] %v609
                  %v611 = vld [vmem:[%s585 + $0x30] sm:%s578]
                  %612 = vst [vmem:[%s586 + $0x30] sm:%s578] %v611
                  %v613 = vld [vmem:[%s585 + $0x34] sm:%s578]
                  %614 = vst [vmem:[%s586 + $0x34] sm:%s578] %v613
                  %v615 = vld [vmem:[%s585 + $0x38] sm:%s578]
                  %616 = vst [vmem:[%s586 + $0x38] sm:%s578] %v615
                  %v617 = vld [vmem:[%s585 + $0x3c] sm:%s578]
                  %618 = vst [vmem:[%s586 + $0x3c] sm:%s578] %v617
                  %v619 = vld [vmem:[%s585 + $0x40] sm:%s578]
                  %620 = vst [vmem:[%s586 + $0x40] sm:%s578] %v619
                  %v621 = vld [vmem:[%s585 + $0x44] sm:%s578]
                  %622 = vst [vmem:[%s586 + $0x44] sm:%s578] %v621
                  %v623 = vld [vmem:[%s585 + $0x48] sm:%s578]
                  %624 = vst [vmem:[%s586 + $0x48] sm:%s578] %v623
                  %v625 = vld [vmem:[%s585 + $0x4c] sm:%s578]
                  %626 = vst [vmem:[%s586 + $0x4c] sm:%s578] %v625
                  %v627 = vld [vmem:[%s585 + $0x50] sm:%s578]
                  %628 = vst [vmem:[%s586 + $0x50] sm:%s578] %v627
                  %v629 = vld [vmem:[%s585 + $0x54] sm:%s578]
                  %630 = vst [vmem:[%s586 + $0x54] sm:%s578] %v629
                  %v631 = vld [vmem:[%s585 + $0x58] sm:%s578]
                  %632 = vst [vmem:[%s586 + $0x58] sm:%s578] %v631
                  %v633 = vld [vmem:[%s585 + $0x5c] sm:%s578]
                  %634 = vst [vmem:[%s586 + $0x5c] sm:%s578] %v633
                  %v635 = vld [vmem:[%s585 + $0x60] sm:%s578]
                  %636 = vst [vmem:[%s586 + $0x60] sm:%s578] %v635
                  %v637 = vld [vmem:[%s585 + $0x64] sm:%s578]
                  %638 = vst [vmem:[%s586 + $0x64] sm:%s578] %v637
                  %v639 = vld [vmem:[%s585 + $0x68] sm:%s578]
                  %640 = vst [vmem:[%s586 + $0x68] sm:%s578] %v639
                  %v641 = vld [vmem:[%s585 + $0x6c] sm:%s578]
                  %642 = vst [vmem:[%s586 + $0x6c] sm:%s578] %v641
                  %v643 = vld [vmem:[%s585 + $0x70] sm:%s578]
                  %644 = vst [vmem:[%s586 + $0x70] sm:%s578] %v643
                  %v645 = vld [vmem:[%s585 + $0x74] sm:%s578]
                  %646 = vst [vmem:[%s586 + $0x74] sm:%s578] %v645
                  %v647 = vld [vmem:[%s585 + $0x78] sm:%s578]
                  %648 = vst [vmem:[%s586 + $0x78] sm:%s578] %v647
                  %v649 = vld [vmem:[%s585 + $0x7c] sm:%s578]
                  %650 = vst [vmem:[%s586 + $0x7c] sm:%s578] %v649
                  %v651 = vld [vmem:[%s585 + $0x180] sm:%s578]
                  %652 = vst [vmem:[%s586 + $0x80] sm:%s578] %v651
                  %v653 = vld [vmem:[%s585 + $0x184] sm:%s578]
                  %654 = vst [vmem:[%s586 + $0x84] sm:%s578] %v653
                  %v655 = vld [vmem:[%s585 + $0x188] sm:%s578]
                  %656 = vst [vmem:[%s586 + $0x88] sm:%s578] %v655
                  %v657 = vld [vmem:[%s585 + $0x18c] sm:%s578]
                  %658 = vst [vmem:[%s586 + $0x8c] sm:%s578] %v657
                  %v659 = vld [vmem:[%s585 + $0x190] sm:%s578]
                  %660 = vst [vmem:[%s586 + $0x90] sm:%s578] %v659
                  %v661 = vld [vmem:[%s585 + $0x194] sm:%s578]
                  %662 = vst [vmem:[%s586 + $0x94] sm:%s578] %v661
                  %v663 = vld [vmem:[%s585 + $0x198] sm:%s578]
                  %664 = vst [vmem:[%s586 + $0x98] sm:%s578] %v663
                  %v665 = vld [vmem:[%s585 + $0x19c] sm:%s578]
                  %666 = vst [vmem:[%s586 + $0x9c] sm:%s578] %v665
                  %v667 = vld [vmem:[%s585 + $0x1a0] sm:%s578]
                  %668 = vst [vmem:[%s586 + $0xa0] sm:%s578] %v667
                  %v669 = vld [vmem:[%s585 + $0x1a4] sm:%s578]
                  %670 = vst [vmem:[%s586 + $0xa4] sm:%s578] %v669
                  %v671 = vld [vmem:[%s585 + $0x1a8] sm:%s578]
                  %672 = vst [vmem:[%s586 + $0xa8] sm:%s578] %v671
                  %v673 = vld [vmem:[%s585 + $0x1ac] sm:%s578]
                  %674 = vst [vmem:[%s586 + $0xac] sm:%s578] %v673
                  %v675 = vld [vmem:[%s585 + $0x1b0] sm:%s578]
                  %676 = vst [vmem:[%s586 + $0xb0] sm:%s578] %v675
                  %v677 = vld [vmem:[%s585 + $0x1b4] sm:%s578]
                  %678 = vst [vmem:[%s586 + $0xb4] sm:%s578] %v677
                  %v679 = vld [vmem:[%s585 + $0x1b8] sm:%s578]
                  %680 = vst [vmem:[%s586 + $0xb8] sm:%s578] %v679
                  %v681 = vld [vmem:[%s585 + $0x1bc] sm:%s578]
                  %682 = vst [vmem:[%s586 + $0xbc] sm:%s578] %v681
                  %v683 = vld [vmem:[%s585 + $0x1c0] sm:%s578]
                  %684 = vst [vmem:[%s586 + $0xc0] sm:%s578] %v683
                  %v685 = vld [vmem:[%s585 + $0x1c4] sm:%s578]
                  %686 = vst [vmem:[%s586 + $0xc4] sm:%s578] %v685
                  %v687 = vld [vmem:[%s585 + $0x1c8] sm:%s578]
                  %688 = vst [vmem:[%s586 + $0xc8] sm:%s578] %v687
                  %v689 = vld [vmem:[%s585 + $0x1cc] sm:%s578]
                  %690 = vst [vmem:[%s586 + $0xcc] sm:%s578] %v689
                  %v691 = vld [vmem:[%s585 + $0x1d0] sm:%s578]
                  %692 = vst [vmem:[%s586 + $0xd0] sm:%s578] %v691
                  %v693 = vld [vmem:[%s585 + $0x1d4] sm:%s578]
                  %694 = vst [vmem:[%s586 + $0xd4] sm:%s578] %v693
                  %v695 = vld [vmem:[%s585 + $0x1d8] sm:%s578]
                  %696 = vst [vmem:[%s586 + $0xd8] sm:%s578] %v695
                  %v697 = vld [vmem:[%s585 + $0x1dc] sm:%s578]
                  %698 = vst [vmem:[%s586 + $0xdc] sm:%s578] %v697
                  %v699 = vld [vmem:[%s585 + $0x1e0] sm:%s578]
                  %700 = vst [vmem:[%s586 + $0xe0] sm:%s578] %v699
                  %v701 = vld [vmem:[%s585 + $0x1e4] sm:%s578]
                  %702 = vst [vmem:[%s586 + $0xe4] sm:%s578] %v701
                  %v703 = vld [vmem:[%s585 + $0x1e8] sm:%s578]
                  %704 = vst [vmem:[%s586 + $0xe8] sm:%s578] %v703
                  %v705 = vld [vmem:[%s585 + $0x1ec] sm:%s578]
                  %706 = vst [vmem:[%s586 + $0xec] sm:%s578] %v705
                  %v707 = vld [vmem:[%s585 + $0x1f0] sm:%s578]
                  %708 = vst [vmem:[%s586 + $0xf0] sm:%s578] %v707
                  %v709 = vld [vmem:[%s585 + $0x1f4] sm:%s578]
                  %710 = vst [vmem:[%s586 + $0xf4] sm:%s578] %v709
                  %v711 = vld [vmem:[%s585 + $0x1f8] sm:%s578]
                  %712 = vst [vmem:[%s586 + $0xf8] sm:%s578] %v711
                  %v713 = vld [vmem:[%s585 + $0x1fc] sm:%s578]
                  %714 = vst [vmem:[%s586 + $0xfc] sm:%s578] %v713
                  %v715 = vld [vmem:[%s585 + $0x300] sm:%s578]
                  %716 = vst [vmem:[%s586 + $0x100] sm:%s578] %v715
                  %v717 = vld [vmem:[%s585 + $0x304] sm:%s578]
                  %718 = vst [vmem:[%s586 + $0x104] sm:%s578] %v717
                  %v719 = vld [vmem:[%s585 + $0x308] sm:%s578]
                  %720 = vst [vmem:[%s586 + $0x108] sm:%s578] %v719
                  %v721 = vld [vmem:[%s585 + $0x30c] sm:%s578]
                  %722 = vst [vmem:[%s586 + $0x10c] sm:%s578] %v721
                  %v723 = vld [vmem:[%s585 + $0x310] sm:%s578]
                  %724 = vst [vmem:[%s586 + $0x110] sm:%s578] %v723
                  %v725 = vld [vmem:[%s585 + $0x314] sm:%s578]
                  %726 = vst [vmem:[%s586 + $0x114] sm:%s578] %v725
                  %v727 = vld [vmem:[%s585 + $0x318] sm:%s578]
                  %728 = vst [vmem:[%s586 + $0x118] sm:%s578] %v727
                  %v729 = vld [vmem:[%s585 + $0x31c] sm:%s578]
                  %730 = vst [vmem:[%s586 + $0x11c] sm:%s578] %v729
                  %v731 = vld [vmem:[%s585 + $0x320] sm:%s578]
                  %732 = vst [vmem:[%s586 + $0x120] sm:%s578] %v731
                  %v733 = vld [vmem:[%s585 + $0x324] sm:%s578]
                  %734 = vst [vmem:[%s586 + $0x124] sm:%s578] %v733
                  %v735 = vld [vmem:[%s585 + $0x328] sm:%s578]
                  %736 = vst [vmem:[%s586 + $0x128] sm:%s578] %v735
                  %v737 = vld [vmem:[%s585 + $0x32c] sm:%s578]
                  %738 = vst [vmem:[%s586 + $0x12c] sm:%s578] %v737
                  %v739 = vld [vmem:[%s585 + $0x330] sm:%s578]
                  %740 = vst [vmem:[%s586 + $0x130] sm:%s578] %v739
                  %v741 = vld [vmem:[%s585 + $0x334] sm:%s578]
                  %742 = vst [vmem:[%s586 + $0x134] sm:%s578] %v741
                  %v743 = vld [vmem:[%s585 + $0x338] sm:%s578]
                  %744 = vst [vmem:[%s586 + $0x138] sm:%s578] %v743
                  %v745 = vld [vmem:[%s585 + $0x33c] sm:%s578]
                  %746 = vst [vmem:[%s586 + $0x13c] sm:%s578] %v745
                  %v747 = vld [vmem:[%s585 + $0x340] sm:%s578]
                  %748 = vst [vmem:[%s586 + $0x140] sm:%s578] %v747
                  %v749 = vld [vmem:[%s585 + $0x344] sm:%s578]
                  %750 = vst [vmem:[%s586 + $0x144] sm:%s578] %v749
                  %v751 = vld [vmem:[%s585 + $0x348] sm:%s578]
                  %752 = vst [vmem:[%s586 + $0x148] sm:%s578] %v751
                  %v753 = vld [vmem:[%s585 + $0x34c] sm:%s578]
                  %754 = vst [vmem:[%s586 + $0x14c] sm:%s578] %v753
                  %v755 = vld [vmem:[%s585 + $0x350] sm:%s578]
                  %756 = vst [vmem:[%s586 + $0x150] sm:%s578] %v755
                  %v757 = vld [vmem:[%s585 + $0x354] sm:%s578]
                  %758 = vst [vmem:[%s586 + $0x154] sm:%s578] %v757
                  %v759 = vld [vmem:[%s585 + $0x358] sm:%s578]
                  %760 = vst [vmem:[%s586 + $0x158] sm:%s578] %v759
                  %v761 = vld [vmem:[%s585 + $0x35c] sm:%s578]
                  %762 = vst [vmem:[%s586 + $0x15c] sm:%s578] %v761
                  %v763 = vld [vmem:[%s585 + $0x360] sm:%s578]
                  %764 = vst [vmem:[%s586 + $0x160] sm:%s578] %v763
                  %v765 = vld [vmem:[%s585 + $0x364] sm:%s578]
                  %766 = vst [vmem:[%s586 + $0x164] sm:%s578] %v765
                  %v767 = vld [vmem:[%s585 + $0x368] sm:%s578]
                  %768 = vst [vmem:[%s586 + $0x168] sm:%s578] %v767
                  %v769 = vld [vmem:[%s585 + $0x36c] sm:%s578]
                  %770 = vst [vmem:[%s586 + $0x16c] sm:%s578] %v769
                  %v771 = vld [vmem:[%s585 + $0x370] sm:%s578]
                  %772 = vst [vmem:[%s586 + $0x170] sm:%s578] %v771
                  %v773 = vld [vmem:[%s585 + $0x374] sm:%s578]
                  %774 = vst [vmem:[%s586 + $0x174] sm:%s578] %v773
                  %v775 = vld [vmem:[%s585 + $0x378] sm:%s578]
                  %776 = vst [vmem:[%s586 + $0x178] sm:%s578] %v775
                  %v777 = vld [vmem:[%s585 + $0x37c] sm:%s578]
                  %778 = vst [vmem:[%s586 + $0x17c] sm:%s578] %v777
                $region87: #{resnet_cnn_ex_forward.1} parent=74 // loop_footer
                  %s584 = sadd.s32 1, %s580
                $region88: #{resnet_cnn_ex_forward.1} parent=74 // loop_footer_branch
                  %579 = sbr.rel target = $region84
                $region89: #{resnet_cnn_ex_forward.1} parent=74 // loop_exit
                  _
              $region75: #{resnet_cnn_ex_forward.1} parent=59 // pred_fallthru
                _
            $region60: #{resnet_cnn_ex_forward.1} parent=55 // pred_fallthru
              _
            // Predicated region
            $region61: #{resnet_cnn_ex_forward.1} parent=55 // pred_check
              _
            $region62: #{resnet_cnn_ex_forward.1} parent=55 // pred_check_branch
              %364 = sbr.rel (0) target = $region64
            $region63: #{resnet_cnn_ex_forward.1} parent=55 // pred_region
              %s366 = ssub.s32 16, 1
              loop: start=0, step=1, limit=1
              $region65: #{resnet_cnn_ex_forward.1} parent=63 // loop_pre_header
                _
              $region66: #{resnet_cnn_ex_forward.1} parent=63 // loop_header
                %s368 = sphi 0, %s372
                %p369 = scmp.ge.s32.totalorder %s368, 1
                %s373 = sphi %s358, %s358
                %s374 = sphi %s355, %s355
              $region67: #{resnet_cnn_ex_forward.1} parent=63 // loop_header_branch
                %371 = sbr.rel (%p369) target = $region71
              $region68: #{resnet_cnn_ex_forward.1} parent=63 // loop_body
                %v375 = vld [vmem:[%s373] sm:%s366]
                %376 = vst [vmem:[%s374] sm:%s366] %v375
                %v377 = vld [vmem:[%s373 + $0x4] sm:%s366]
                %378 = vst [vmem:[%s374 + $0x4] sm:%s366] %v377
                %v379 = vld [vmem:[%s373 + $0x8] sm:%s366]
                %380 = vst [vmem:[%s374 + $0x8] sm:%s366] %v379
                %v381 = vld [vmem:[%s373 + $0xc] sm:%s366]
                %382 = vst [vmem:[%s374 + $0xc] sm:%s366] %v381
                %v383 = vld [vmem:[%s373 + $0x10] sm:%s366]
                %384 = vst [vmem:[%s374 + $0x10] sm:%s366] %v383
                %v385 = vld [vmem:[%s373 + $0x14] sm:%s366]
                %386 = vst [vmem:[%s374 + $0x14] sm:%s366] %v385
                %v387 = vld [vmem:[%s373 + $0x18] sm:%s366]
                %388 = vst [vmem:[%s374 + $0x18] sm:%s366] %v387
                %v389 = vld [vmem:[%s373 + $0x1c] sm:%s366]
                %390 = vst [vmem:[%s374 + $0x1c] sm:%s366] %v389
                %v391 = vld [vmem:[%s373 + $0x20] sm:%s366]
                %392 = vst [vmem:[%s374 + $0x20] sm:%s366] %v391
                %v393 = vld [vmem:[%s373 + $0x24] sm:%s366]
                %394 = vst [vmem:[%s374 + $0x24] sm:%s366] %v393
                %v395 = vld [vmem:[%s373 + $0x28] sm:%s366]
                %396 = vst [vmem:[%s374 + $0x28] sm:%s366] %v395
                %v397 = vld [vmem:[%s373 + $0x2c] sm:%s366]
                %398 = vst [vmem:[%s374 + $0x2c] sm:%s366] %v397
                %v399 = vld [vmem:[%s373 + $0x30] sm:%s366]
                %400 = vst [vmem:[%s374 + $0x30] sm:%s366] %v399
                %v401 = vld [vmem:[%s373 + $0x34] sm:%s366]
                %402 = vst [vmem:[%s374 + $0x34] sm:%s366] %v401
                %v403 = vld [vmem:[%s373 + $0x38] sm:%s366]
                %404 = vst [vmem:[%s374 + $0x38] sm:%s366] %v403
                %v405 = vld [vmem:[%s373 + $0x3c] sm:%s366]
                %406 = vst [vmem:[%s374 + $0x3c] sm:%s366] %v405
                %v407 = vld [vmem:[%s373 + $0x40] sm:%s366]
                %408 = vst [vmem:[%s374 + $0x40] sm:%s366] %v407
                %v409 = vld [vmem:[%s373 + $0x44] sm:%s366]
                %410 = vst [vmem:[%s374 + $0x44] sm:%s366] %v409
                %v411 = vld [vmem:[%s373 + $0x48] sm:%s366]
                %412 = vst [vmem:[%s374 + $0x48] sm:%s366] %v411
                %v413 = vld [vmem:[%s373 + $0x4c] sm:%s366]
                %414 = vst [vmem:[%s374 + $0x4c] sm:%s366] %v413
                %v415 = vld [vmem:[%s373 + $0x50] sm:%s366]
                %416 = vst [vmem:[%s374 + $0x50] sm:%s366] %v415
                %v417 = vld [vmem:[%s373 + $0x54] sm:%s366]
                %418 = vst [vmem:[%s374 + $0x54] sm:%s366] %v417
                %v419 = vld [vmem:[%s373 + $0x58] sm:%s366]
                %420 = vst [vmem:[%s374 + $0x58] sm:%s366] %v419
                %v421 = vld [vmem:[%s373 + $0x5c] sm:%s366]
                %422 = vst [vmem:[%s374 + $0x5c] sm:%s366] %v421
                %v423 = vld [vmem:[%s373 + $0x60] sm:%s366]
                %424 = vst [vmem:[%s374 + $0x60] sm:%s366] %v423
                %v425 = vld [vmem:[%s373 + $0x64] sm:%s366]
                %426 = vst [vmem:[%s374 + $0x64] sm:%s366] %v425
                %v427 = vld [vmem:[%s373 + $0x68] sm:%s366]
                %428 = vst [vmem:[%s374 + $0x68] sm:%s366] %v427
                %v429 = vld [vmem:[%s373 + $0x6c] sm:%s366]
                %430 = vst [vmem:[%s374 + $0x6c] sm:%s366] %v429
                %v431 = vld [vmem:[%s373 + $0x70] sm:%s366]
                %432 = vst [vmem:[%s374 + $0x70] sm:%s366] %v431
                %v433 = vld [vmem:[%s373 + $0x74] sm:%s366]
                %434 = vst [vmem:[%s374 + $0x74] sm:%s366] %v433
                %v435 = vld [vmem:[%s373 + $0x78] sm:%s366]
                %436 = vst [vmem:[%s374 + $0x78] sm:%s366] %v435
                %v437 = vld [vmem:[%s373 + $0x7c] sm:%s366]
                %438 = vst [vmem:[%s374 + $0x7c] sm:%s366] %v437
                %v439 = vld [vmem:[%s373 + $0x180] sm:%s366]
                %440 = vst [vmem:[%s374 + $0x80] sm:%s366] %v439
                %v441 = vld [vmem:[%s373 + $0x184] sm:%s366]
                %442 = vst [vmem:[%s374 + $0x84] sm:%s366] %v441
                %v443 = vld [vmem:[%s373 + $0x188] sm:%s366]
                %444 = vst [vmem:[%s374 + $0x88] sm:%s366] %v443
                %v445 = vld [vmem:[%s373 + $0x18c] sm:%s366]
                %446 = vst [vmem:[%s374 + $0x8c] sm:%s366] %v445
                %v447 = vld [vmem:[%s373 + $0x190] sm:%s366]
                %448 = vst [vmem:[%s374 + $0x90] sm:%s366] %v447
                %v449 = vld [vmem:[%s373 + $0x194] sm:%s366]
                %450 = vst [vmem:[%s374 + $0x94] sm:%s366] %v449
                %v451 = vld [vmem:[%s373 + $0x198] sm:%s366]
                %452 = vst [vmem:[%s374 + $0x98] sm:%s366] %v451
                %v453 = vld [vmem:[%s373 + $0x19c] sm:%s366]
                %454 = vst [vmem:[%s374 + $0x9c] sm:%s366] %v453
                %v455 = vld [vmem:[%s373 + $0x1a0] sm:%s366]
                %456 = vst [vmem:[%s374 + $0xa0] sm:%s366] %v455
                %v457 = vld [vmem:[%s373 + $0x1a4] sm:%s366]
                %458 = vst [vmem:[%s374 + $0xa4] sm:%s366] %v457
                %v459 = vld [vmem:[%s373 + $0x1a8] sm:%s366]
                %460 = vst [vmem:[%s374 + $0xa8] sm:%s366] %v459
                %v461 = vld [vmem:[%s373 + $0x1ac] sm:%s366]
                %462 = vst [vmem:[%s374 + $0xac] sm:%s366] %v461
                %v463 = vld [vmem:[%s373 + $0x1b0] sm:%s366]
                %464 = vst [vmem:[%s374 + $0xb0] sm:%s366] %v463
                %v465 = vld [vmem:[%s373 + $0x1b4] sm:%s366]
                %466 = vst [vmem:[%s374 + $0xb4] sm:%s366] %v465
                %v467 = vld [vmem:[%s373 + $0x1b8] sm:%s366]
                %468 = vst [vmem:[%s374 + $0xb8] sm:%s366] %v467
                %v469 = vld [vmem:[%s373 + $0x1bc] sm:%s366]
                %470 = vst [vmem:[%s374 + $0xbc] sm:%s366] %v469
                %v471 = vld [vmem:[%s373 + $0x1c0] sm:%s366]
                %472 = vst [vmem:[%s374 + $0xc0] sm:%s366] %v471
                %v473 = vld [vmem:[%s373 + $0x1c4] sm:%s366]
                %474 = vst [vmem:[%s374 + $0xc4] sm:%s366] %v473
                %v475 = vld [vmem:[%s373 + $0x1c8] sm:%s366]
                %476 = vst [vmem:[%s374 + $0xc8] sm:%s366] %v475
                %v477 = vld [vmem:[%s373 + $0x1cc] sm:%s366]
                %478 = vst [vmem:[%s374 + $0xcc] sm:%s366] %v477
                %v479 = vld [vmem:[%s373 + $0x1d0] sm:%s366]
                %480 = vst [vmem:[%s374 + $0xd0] sm:%s366] %v479
                %v481 = vld [vmem:[%s373 + $0x1d4] sm:%s366]
                %482 = vst [vmem:[%s374 + $0xd4] sm:%s366] %v481
                %v483 = vld [vmem:[%s373 + $0x1d8] sm:%s366]
                %484 = vst [vmem:[%s374 + $0xd8] sm:%s366] %v483
                %v485 = vld [vmem:[%s373 + $0x1dc] sm:%s366]
                %486 = vst [vmem:[%s374 + $0xdc] sm:%s366] %v485
                %v487 = vld [vmem:[%s373 + $0x1e0] sm:%s366]
                %488 = vst [vmem:[%s374 + $0xe0] sm:%s366] %v487
                %v489 = vld [vmem:[%s373 + $0x1e4] sm:%s366]
                %490 = vst [vmem:[%s374 + $0xe4] sm:%s366] %v489
                %v491 = vld [vmem:[%s373 + $0x1e8] sm:%s366]
                %492 = vst [vmem:[%s374 + $0xe8] sm:%s366] %v491
                %v493 = vld [vmem:[%s373 + $0x1ec] sm:%s366]
                %494 = vst [vmem:[%s374 + $0xec] sm:%s366] %v493
                %v495 = vld [vmem:[%s373 + $0x1f0] sm:%s366]
                %496 = vst [vmem:[%s374 + $0xf0] sm:%s366] %v495
                %v497 = vld [vmem:[%s373 + $0x1f4] sm:%s366]
                %498 = vst [vmem:[%s374 + $0xf4] sm:%s366] %v497
                %v499 = vld [vmem:[%s373 + $0x1f8] sm:%s366]
                %500 = vst [vmem:[%s374 + $0xf8] sm:%s366] %v499
                %v501 = vld [vmem:[%s373 + $0x1fc] sm:%s366]
                %502 = vst [vmem:[%s374 + $0xfc] sm:%s366] %v501
                %v503 = vld [vmem:[%s373 + $0x300] sm:%s366]
                %504 = vst [vmem:[%s374 + $0x100] sm:%s366] %v503
                %v505 = vld [vmem:[%s373 + $0x304] sm:%s366]
                %506 = vst [vmem:[%s374 + $0x104] sm:%s366] %v505
                %v507 = vld [vmem:[%s373 + $0x308] sm:%s366]
                %508 = vst [vmem:[%s374 + $0x108] sm:%s366] %v507
                %v509 = vld [vmem:[%s373 + $0x30c] sm:%s366]
                %510 = vst [vmem:[%s374 + $0x10c] sm:%s366] %v509
                %v511 = vld [vmem:[%s373 + $0x310] sm:%s366]
                %512 = vst [vmem:[%s374 + $0x110] sm:%s366] %v511
                %v513 = vld [vmem:[%s373 + $0x314] sm:%s366]
                %514 = vst [vmem:[%s374 + $0x114] sm:%s366] %v513
                %v515 = vld [vmem:[%s373 + $0x318] sm:%s366]
                %516 = vst [vmem:[%s374 + $0x118] sm:%s366] %v515
                %v517 = vld [vmem:[%s373 + $0x31c] sm:%s366]
                %518 = vst [vmem:[%s374 + $0x11c] sm:%s366] %v517
                %v519 = vld [vmem:[%s373 + $0x320] sm:%s366]
                %520 = vst [vmem:[%s374 + $0x120] sm:%s366] %v519
                %v521 = vld [vmem:[%s373 + $0x324] sm:%s366]
                %522 = vst [vmem:[%s374 + $0x124] sm:%s366] %v521
                %v523 = vld [vmem:[%s373 + $0x328] sm:%s366]
                %524 = vst [vmem:[%s374 + $0x128] sm:%s366] %v523
                %v525 = vld [vmem:[%s373 + $0x32c] sm:%s366]
                %526 = vst [vmem:[%s374 + $0x12c] sm:%s366] %v525
                %v527 = vld [vmem:[%s373 + $0x330] sm:%s366]
                %528 = vst [vmem:[%s374 + $0x130] sm:%s366] %v527
                %v529 = vld [vmem:[%s373 + $0x334] sm:%s366]
                %530 = vst [vmem:[%s374 + $0x134] sm:%s366] %v529
                %v531 = vld [vmem:[%s373 + $0x338] sm:%s366]
                %532 = vst [vmem:[%s374 + $0x138] sm:%s366] %v531
                %v533 = vld [vmem:[%s373 + $0x33c] sm:%s366]
                %534 = vst [vmem:[%s374 + $0x13c] sm:%s366] %v533
                %v535 = vld [vmem:[%s373 + $0x340] sm:%s366]
                %536 = vst [vmem:[%s374 + $0x140] sm:%s366] %v535
                %v537 = vld [vmem:[%s373 + $0x344] sm:%s366]
                %538 = vst [vmem:[%s374 + $0x144] sm:%s366] %v537
                %v539 = vld [vmem:[%s373 + $0x348] sm:%s366]
                %540 = vst [vmem:[%s374 + $0x148] sm:%s366] %v539
                %v541 = vld [vmem:[%s373 + $0x34c] sm:%s366]
                %542 = vst [vmem:[%s374 + $0x14c] sm:%s366] %v541
                %v543 = vld [vmem:[%s373 + $0x350] sm:%s366]
                %544 = vst [vmem:[%s374 + $0x150] sm:%s366] %v543
                %v545 = vld [vmem:[%s373 + $0x354] sm:%s366]
                %546 = vst [vmem:[%s374 + $0x154] sm:%s366] %v545
                %v547 = vld [vmem:[%s373 + $0x358] sm:%s366]
                %548 = vst [vmem:[%s374 + $0x158] sm:%s366] %v547
                %v549 = vld [vmem:[%s373 + $0x35c] sm:%s366]
                %550 = vst [vmem:[%s374 + $0x15c] sm:%s366] %v549
                %v551 = vld [vmem:[%s373 + $0x360] sm:%s366]
                %552 = vst [vmem:[%s374 + $0x160] sm:%s366] %v551
                %v553 = vld [vmem:[%s373 + $0x364] sm:%s366]
                %554 = vst [vmem:[%s374 + $0x164] sm:%s366] %v553
                %v555 = vld [vmem:[%s373 + $0x368] sm:%s366]
                %556 = vst [vmem:[%s374 + $0x168] sm:%s366] %v555
                %v557 = vld [vmem:[%s373 + $0x36c] sm:%s366]
                %558 = vst [vmem:[%s374 + $0x16c] sm:%s366] %v557
                %v559 = vld [vmem:[%s373 + $0x370] sm:%s366]
                %560 = vst [vmem:[%s374 + $0x170] sm:%s366] %v559
                %v561 = vld [vmem:[%s373 + $0x374] sm:%s366]
                %562 = vst [vmem:[%s374 + $0x174] sm:%s366] %v561
                %v563 = vld [vmem:[%s373 + $0x378] sm:%s366]
                %564 = vst [vmem:[%s374 + $0x178] sm:%s366] %v563
                %v565 = vld [vmem:[%s373 + $0x37c] sm:%s366]
                %566 = vst [vmem:[%s374 + $0x17c] sm:%s366] %v565
              $region69: #{resnet_cnn_ex_forward.1} parent=63 // loop_footer
                %s372 = sadd.s32 1, %s368
              $region70: #{resnet_cnn_ex_forward.1} parent=63 // loop_footer_branch
                %367 = sbr.rel target = $region66
              $region71: #{resnet_cnn_ex_forward.1} parent=63 // loop_exit
                _
            $region64: #{resnet_cnn_ex_forward.1} parent=55 // pred_fallthru
              _
          $region56: #{resnet_cnn_ex_forward.1} parent=51 // pred_fallthru
            _
          %779 = vnop
        $region52: #{resnet_cnn_ex_forward.1} parent=35 // pred_fallthru
          _
      $region36: #{resnet_cnn_ex_forward.1} parent=5 // pred_fallthru
        _
      %p780 = scmp.le.s32.totalorder 1, %s15
      %p781 = scmp.lt.s32.totalorder %s15, 4
      %p782 = pnand %p780, %p781
      %p783 = pneg %p782
      // Predicated region
      $region90: #{resnet_cnn_ex_forward.1} parent=5 // pred_check
        _
      $region91: #{resnet_cnn_ex_forward.1} parent=5 // pred_check_branch
        %785 = sbr.rel (%p782) target = $region93
      $region92: #{resnet_cnn_ex_forward.1} parent=5 // pred_region
        %s786 = ssub.s32 %s15, 1
        %s787 = sand.u32 %s128, 1
        %s788 = sand.u32 %s128, 1
        %s789 = smul.addr %s788, 384
        %s790 = scalar_lea.vmem [#allocation3], %s789
        // Predicated region
        $region94: #{resnet_cnn_ex_forward.1} parent=92 // pred_check
          %p791 = pneg %p141
        $region95: #{resnet_cnn_ex_forward.1} parent=92 // pred_check_branch
          %793 = sbr.rel (%p791) target = $region97
        $region96: #{resnet_cnn_ex_forward.1} parent=92 // pred_region
          _
        $region97: #{resnet_cnn_ex_forward.1} parent=92 // pred_fallthru
          _
        %s794 = smul.u32 2, %s25
        %p795 = scmp.lt.s32.totalorder %s24, 0
        %s796 = scalar_select %p795, %s24, 0
        %p797 = scmp.lt.s32.totalorder %s794, 17
        %s798 = scalar_select %p797, %s794, 17
        %s799 = smul.addr %s796, 18
        %s800 = sadd.s32 %s798, %s799
        %s801 = smul.addr %s800, 4
        %s802 = scalar_lea.vmem %s0, %s801
        %p803 = pneg %p55
        %p804 = pneg %p52
        %s805 = sadd.s32 %s25, 3
        %s806 = smul.u32 2, %s805
        %p807 = scmp.lt.s32.totalorder %s24, 0
        %s808 = scalar_select %p807, %s24, 0
        %p809 = scmp.lt.s32.totalorder %s806, 17
        %s810 = scalar_select %p809, %s806, 17
        %s811 = smul.addr %s808, 18
        %s812 = sadd.s32 %s810, %s811
        %s813 = smul.addr %s812, 4
        %s814 = scalar_lea.vmem %s1, %s813
        %p815 = pneg %p85
        %p816 = pneg %p82
        %s817 = sadd.s32 %s25, 6
        %s818 = smul.u32 2, %s817
        %p819 = scmp.lt.s32.totalorder %s24, 0
        %s820 = scalar_select %p819, %s24, 0
        %p821 = scmp.lt.s32.totalorder %s818, 17
        %s822 = scalar_select %p821, %s818, 17
        %s823 = smul.addr %s820, 18
        %s824 = sadd.s32 %s822, %s823
        %s825 = smul.addr %s824, 4
        %s826 = scalar_lea.vmem %s2, %s825
        %p827 = pneg %p115
        %p828 = pneg %p112
        %s829 = sand.u32 %s128, 1
        %s830 = sand.u32 %s128, 1
        %s831 = smul.addr %s830, 384
        %s832 = scalar_lea.vmem [#allocation3], %s831
        %p833 = pneg %p141
        %p834 = pneg %p138
        %p835 = pneg %p162
        %p836 = pneg %p159
        %p837 = pneg %p183
        %p838 = pneg %p180
        %p839 = pneg %p204
        %p840 = pneg %p201
        %p841 = pneg %p225
        %p842 = pneg %p222
        %p843 = pneg %p246
        %p844 = pneg %p243
        %p845 = pneg %p272
        %p846 = pneg %p269
        %p847 = scmp.lt.s32.totalorder %s24, 0
        %s848 = scalar_select %p847, %s24, 0
        %s849 = smul.addr %s848, 8
        %s850 = scalar_lea.vmem %s9, %s849
        %s851 = smul.u32 2, %s25
        %p852 = scmp.lt.s32.totalorder %s24, 0
        %s853 = scalar_select %p852, %s24, 0
        %p854 = scmp.lt.s32.totalorder %s851, 17
        %s855 = scalar_select %p854, %s851, 17
        %s856 = smul.addr %s853, 18
        %s857 = sadd.s32 %s855, %s856
        %s858 = smul.addr %s857, 4
        %s859 = scalar_lea.vmem %s0, %s858
        %s860 = smul.u32 2, %s25
        %s861 = sadd.s32 %s25, 3
        %s862 = smul.u32 2, %s861
        %p863 = scmp.lt.s32.totalorder %s24, 0
        %s864 = scalar_select %p863, %s24, 0
        %p865 = scmp.lt.s32.totalorder %s862, 17
        %s866 = scalar_select %p865, %s862, 17
        %s867 = smul.addr %s864, 18
        %s868 = sadd.s32 %s866, %s867
        %s869 = smul.addr %s868, 4
        %s870 = scalar_lea.vmem %s1, %s869
        %s871 = sadd.s32 %s25, 3
        %s872 = smul.u32 2, %s871
        %s873 = sadd.s32 %s25, 6
        %s874 = smul.u32 2, %s873
        %p875 = scmp.lt.s32.totalorder %s24, 0
        %s876 = scalar_select %p875, %s24, 0
        %p877 = scmp.lt.s32.totalorder %s874, 17
        %s878 = scalar_select %p877, %s874, 17
        %s879 = smul.addr %s876, 18
        %s880 = sadd.s32 %s878, %s879
        %s881 = smul.addr %s880, 4
        %s882 = scalar_lea.vmem %s2, %s881
        %s883 = sadd.s32 %s25, 6
        %s884 = smul.u32 2, %s883
        %s885 = smul.u32 32, %s25
        %p886 = scmp.lt.s32.totalorder %s24, 0
        %s887 = scalar_select %p886, %s24, 0
        %s888 = smul.addr %s887, 8
        %s889 = scalar_lea.vmem %s9, %s888
        %p890 = scmp.eq.s32.totalorder %s25, 0
        // Predicated region
        $region98: #{resnet_cnn_ex_forward.1} parent=92 // pred_check
          %p891 = pneg %p890
        $region99: #{resnet_cnn_ex_forward.1} parent=92 // pred_check_branch
          %893 = sbr.rel (%p891) target = $region101
        $region100: #{resnet_cnn_ex_forward.1} parent=92 // pred_region
          %894 = vst [vmem:[#allocation2] sm:$0xff] 0.0
          %895 = vst [vmem:[#allocation2 + $0x8] sm:$0xff] 0.0
          %896 = vst [vmem:[#allocation2 + $0x10] sm:$0xff] 0.0
        $region101: #{resnet_cnn_ex_forward.1} parent=92 // pred_fallthru
          _
        %v897 = vld [vmem:[#allocation2] sm:$0xff]
        %v898 = vld [vmem:[%s859] sm:$0xff]
        %v899 = vld [vmem:[%s790] sm:$0xf]
        %v900 = vld [vmem:[%s790 + $0x4] sm:$0xf]
        %v901 = vld [vmem:[%s790 + $0x8] sm:$0xf]
        %v902 = vld [vmem:[%s790 + $0xc] sm:$0xf]
        %v903 = vld [vmem:[%s790 + $0x10] sm:$0xf]
        %v904 = vld [vmem:[%s790 + $0x14] sm:$0xf]
        %v905 = vld [vmem:[%s790 + $0x18] sm:$0xf]
        %v906 = vld [vmem:[%s790 + $0x1c] sm:$0xf]
        %v907 = vld [vmem:[%s790 + $0x20] sm:$0xf]
        %v908 = vld [vmem:[%s790 + $0x24] sm:$0xf]
        %v909 = vld [vmem:[%s790 + $0x28] sm:$0xf]
        %v910 = vld [vmem:[%s790 + $0x2c] sm:$0xf]
        %v911 = vld [vmem:[%s790 + $0x30] sm:$0xf]
        %v912 = vld [vmem:[%s790 + $0x34] sm:$0xf]
        %v913 = vld [vmem:[%s790 + $0x38] sm:$0xf]
        %v914 = vld [vmem:[%s790 + $0x3c] sm:$0xf]
        %v915 = vld [vmem:[%s790 + $0x40] sm:$0xf]
        %v916 = vld [vmem:[%s790 + $0x44] sm:$0xf]
        %v917 = vld [vmem:[%s790 + $0x48] sm:$0xf]
        %v918 = vld [vmem:[%s790 + $0x4c] sm:$0xf]
        %v919 = vld [vmem:[%s790 + $0x50] sm:$0xf]
        %v920 = vld [vmem:[%s790 + $0x54] sm:$0xf]
        %v921 = vld [vmem:[%s790 + $0x58] sm:$0xf]
        %v922 = vld [vmem:[%s790 + $0x5c] sm:$0xf]
        %v923 = vld [vmem:[%s790 + $0x60] sm:$0xf]
        %v924 = vld [vmem:[%s790 + $0x64] sm:$0xf]
        %v925 = vld [vmem:[%s790 + $0x68] sm:$0xf]
        %v926 = vld [vmem:[%s790 + $0x6c] sm:$0xf]
        %v927 = vld [vmem:[%s790 + $0x70] sm:$0xf]
        %v928 = vld [vmem:[%s790 + $0x74] sm:$0xf]
        %v929 = vld [vmem:[%s790 + $0x78] sm:$0xf]
        %v930 = vld [vmem:[%s790 + $0x7c] sm:$0xf]
        %v932 = vunpack.c.l.b16 %v898
        %v933 = vunpack.c.h.b16 %v898
        %v934 = vpack.c.b16 %v932, %v932
        %v935 = vpack.c.b16 %v933, %v933
        %v970 = vunpack.c.l.b16 %v899
        %v971 = vunpack.c.l.b16 %v900
        %v972 = vunpack.c.l.b16 %v901
        %v973 = vunpack.c.l.b16 %v902
        %v974 = vunpack.c.l.b16 %v903
        %v975 = vunpack.c.l.b16 %v904
        %v976 = vunpack.c.l.b16 %v905
        %v977 = vunpack.c.l.b16 %v906
        %v978 = vunpack.c.l.b16 %v907
        %v979 = vunpack.c.l.b16 %v908
        %v980 = vunpack.c.l.b16 %v909
        %v981 = vunpack.c.l.b16 %v910
        %v982 = vunpack.c.l.b16 %v911
        %v983 = vunpack.c.l.b16 %v912
        %v984 = vunpack.c.l.b16 %v913
        %v985 = vunpack.c.l.b16 %v914
        %v986 = vunpack.c.l.b16 %v915
        %v987 = vunpack.c.l.b16 %v916
        %v988 = vunpack.c.l.b16 %v917
        %v989 = vunpack.c.l.b16 %v918
        %v990 = vunpack.c.l.b16 %v919
        %v991 = vunpack.c.l.b16 %v920
        %v992 = vunpack.c.l.b16 %v921
        %v993 = vunpack.c.l.b16 %v922
        %v994 = vunpack.c.l.b16 %v923
        %v995 = vunpack.c.l.b16 %v924
        %v996 = vunpack.c.l.b16 %v925
        %v997 = vunpack.c.l.b16 %v926
        %v998 = vunpack.c.l.b16 %v927
        %v999 = vunpack.c.l.b16 %v928
        %v1000 = vunpack.c.l.b16 %v929
        %v1001 = vunpack.c.l.b16 %v930
        %v1002 = vpack.c.b16 %v971, %v970
        %v1003 = vpack.c.b16 %v973, %v972
        %v1004 = vpack.c.b16 %v975, %v974
        %v1005 = vpack.c.b16 %v977, %v976
        %v1006 = vpack.c.b16 %v979, %v978
        %v1007 = vpack.c.b16 %v981, %v980
        %v1008 = vpack.c.b16 %v983, %v982
        %v1009 = vpack.c.b16 %v985, %v984
        %v1010 = vpack.c.b16 %v987, %v986
        %v1011 = vpack.c.b16 %v989, %v988
        %v1012 = vpack.c.b16 %v991, %v990
        %v1013 = vpack.c.b16 %v993, %v992
        %v1014 = vpack.c.b16 %v995, %v994
        %v1015 = vpack.c.b16 %v997, %v996
        %v1016 = vpack.c.b16 %v999, %v998
        %v1017 = vpack.c.b16 %v1001, %v1000
        %1034 = vmatpush.bf16.msra.mxu0 %v1009
        %1035 = vmatpush.bf16.msra.mxu0 %v1008
        %1036 = vmatpush.bf16.msra.mxu0 %v1007
        %1037 = vmatpush.bf16.msra.mxu0 %v1006
        %1038 = vmatpush.bf16.msra.mxu0 %v1005
        %1039 = vmatpush.bf16.msra.mxu0 %v1004
        %1040 = vmatpush.bf16.msra.mxu0 %v1003
        %1041 = vmatpush.bf16.msra.mxu0 %v1002
        %1042 = vmatmul.bf16.gmra.mxu0 %v934
        %v1043 = vpop.f32.mrf.mxu0
        %v1044 = vadd.f32 0.0, %v1043
        %v1045 = vpop.f32.mrf.mxu0
        %1046 = vdwg.mxu0
        %1047 = vmatpush.bf16.msra.mxu0 %v1017
        %1048 = vmatpush.bf16.msra.mxu0 %v1016
        %1049 = vmatpush.bf16.msra.mxu0 %v1015
        %1050 = vmatpush.bf16.msra.mxu0 %v1014
        %1051 = vmatpush.bf16.msra.mxu0 %v1013
        %1052 = vmatpush.bf16.msra.mxu0 %v1012
        %1053 = vmatpush.bf16.msra.mxu0 %v1011
        %1054 = vmatpush.bf16.msra.mxu0 %v1010
        %1055 = vmatmul.bf16.gmra.mxu0 %v935
        %v1056 = vpop.f32.mrf.mxu0
        %v1057 = vadd.f32 %v1044, %v1056
        %v1058 = vpop.f32.mrf.mxu0
        %1059 = vdwg.mxu0
        %v1060 = vadd.f32 %v897, %v1057
        %1061 = vst [vmem:[#allocation2] sm:$0xff] %v1060
        %s1062 = scalar_lea.vmem [#allocation2], 8
        %v1063 = vld [vmem:[%s1062] sm:$0xff]
        %v1064 = vld [vmem:[%s870] sm:$0xff]
        %s1065 = scalar_lea.vmem %s790, 128 [#allocation3]
        %v1066 = vld [vmem:[%s1065] sm:$0xf]
        %v1067 = vld [vmem:[%s1065 + $0x4] sm:$0xf]
        %v1068 = vld [vmem:[%s1065 + $0x8] sm:$0xf]
        %v1069 = vld [vmem:[%s1065 + $0xc] sm:$0xf]
        %v1070 = vld [vmem:[%s1065 + $0x10] sm:$0xf]
        %v1071 = vld [vmem:[%s1065 + $0x14] sm:$0xf]
        %v1072 = vld [vmem:[%s1065 + $0x18] sm:$0xf]
        %v1073 = vld [vmem:[%s1065 + $0x1c] sm:$0xf]
        %v1074 = vld [vmem:[%s1065 + $0x20] sm:$0xf]
        %v1075 = vld [vmem:[%s1065 + $0x24] sm:$0xf]
        %v1076 = vld [vmem:[%s1065 + $0x28] sm:$0xf]
        %v1077 = vld [vmem:[%s1065 + $0x2c] sm:$0xf]
        %v1078 = vld [vmem:[%s1065 + $0x30] sm:$0xf]
        %v1079 = vld [vmem:[%s1065 + $0x34] sm:$0xf]
        %v1080 = vld [vmem:[%s1065 + $0x38] sm:$0xf]
        %v1081 = vld [vmem:[%s1065 + $0x3c] sm:$0xf]
        %v1082 = vld [vmem:[%s1065 + $0x40] sm:$0xf]
        %v1083 = vld [vmem:[%s1065 + $0x44] sm:$0xf]
        %v1084 = vld [vmem:[%s1065 + $0x48] sm:$0xf]
        %v1085 = vld [vmem:[%s1065 + $0x4c] sm:$0xf]
        %v1086 = vld [vmem:[%s1065 + $0x50] sm:$0xf]
        %v1087 = vld [vmem:[%s1065 + $0x54] sm:$0xf]
        %v1088 = vld [vmem:[%s1065 + $0x58] sm:$0xf]
        %v1089 = vld [vmem:[%s1065 + $0x5c] sm:$0xf]
        %v1090 = vld [vmem:[%s1065 + $0x60] sm:$0xf]
        %v1091 = vld [vmem:[%s1065 + $0x64] sm:$0xf]
        %v1092 = vld [vmem:[%s1065 + $0x68] sm:$0xf]
        %v1093 = vld [vmem:[%s1065 + $0x6c] sm:$0xf]
        %v1094 = vld [vmem:[%s1065 + $0x70] sm:$0xf]
        %v1095 = vld [vmem:[%s1065 + $0x74] sm:$0xf]
        %v1096 = vld [vmem:[%s1065 + $0x78] sm:$0xf]
        %v1097 = vld [vmem:[%s1065 + $0x7c] sm:$0xf]
        %v1099 = vunpack.c.l.b16 %v1064
        %v1100 = vunpack.c.h.b16 %v1064
        %v1101 = vpack.c.b16 %v1099, %v1099
        %v1102 = vpack.c.b16 %v1100, %v1100
        %v1137 = vunpack.c.l.b16 %v1066
        %v1138 = vunpack.c.l.b16 %v1067
        %v1139 = vunpack.c.l.b16 %v1068
        %v1140 = vunpack.c.l.b16 %v1069
        %v1141 = vunpack.c.l.b16 %v1070
        %v1142 = vunpack.c.l.b16 %v1071
        %v1143 = vunpack.c.l.b16 %v1072
        %v1144 = vunpack.c.l.b16 %v1073
        %v1145 = vunpack.c.l.b16 %v1074
        %v1146 = vunpack.c.l.b16 %v1075
        %v1147 = vunpack.c.l.b16 %v1076
        %v1148 = vunpack.c.l.b16 %v1077
        %v1149 = vunpack.c.l.b16 %v1078
        %v1150 = vunpack.c.l.b16 %v1079
        %v1151 = vunpack.c.l.b16 %v1080
        %v1152 = vunpack.c.l.b16 %v1081
        %v1153 = vunpack.c.l.b16 %v1082
        %v1154 = vunpack.c.l.b16 %v1083
        %v1155 = vunpack.c.l.b16 %v1084
        %v1156 = vunpack.c.l.b16 %v1085
        %v1157 = vunpack.c.l.b16 %v1086
        %v1158 = vunpack.c.l.b16 %v1087
        %v1159 = vunpack.c.l.b16 %v1088
        %v1160 = vunpack.c.l.b16 %v1089
        %v1161 = vunpack.c.l.b16 %v1090
        %v1162 = vunpack.c.l.b16 %v1091
        %v1163 = vunpack.c.l.b16 %v1092
        %v1164 = vunpack.c.l.b16 %v1093
        %v1165 = vunpack.c.l.b16 %v1094
        %v1166 = vunpack.c.l.b16 %v1095
        %v1167 = vunpack.c.l.b16 %v1096
        %v1168 = vunpack.c.l.b16 %v1097
        %v1169 = vpack.c.b16 %v1138, %v1137
        %v1170 = vpack.c.b16 %v1140, %v1139
        %v1171 = vpack.c.b16 %v1142, %v1141
        %v1172 = vpack.c.b16 %v1144, %v1143
        %v1173 = vpack.c.b16 %v1146, %v1145
        %v1174 = vpack.c.b16 %v1148, %v1147
        %v1175 = vpack.c.b16 %v1150, %v1149
        %v1176 = vpack.c.b16 %v1152, %v1151
        %v1177 = vpack.c.b16 %v1154, %v1153
        %v1178 = vpack.c.b16 %v1156, %v1155
        %v1179 = vpack.c.b16 %v1158, %v1157
        %v1180 = vpack.c.b16 %v1160, %v1159
        %v1181 = vpack.c.b16 %v1162, %v1161
        %v1182 = vpack.c.b16 %v1164, %v1163
        %v1183 = vpack.c.b16 %v1166, %v1165
        %v1184 = vpack.c.b16 %v1168, %v1167
        %1201 = vmatpush.bf16.msra.mxu0 %v1176
        %1202 = vmatpush.bf16.msra.mxu0 %v1175
        %1203 = vmatpush.bf16.msra.mxu0 %v1174
        %1204 = vmatpush.bf16.msra.mxu0 %v1173
        %1205 = vmatpush.bf16.msra.mxu0 %v1172
        %1206 = vmatpush.bf16.msra.mxu0 %v1171
        %1207 = vmatpush.bf16.msra.mxu0 %v1170
        %1208 = vmatpush.bf16.msra.mxu0 %v1169
        %1209 = vmatmul.bf16.gmra.mxu0 %v1101
        %v1210 = vpop.f32.mrf.mxu0
        %v1211 = vadd.f32 0.0, %v1210
        %v1212 = vpop.f32.mrf.mxu0
        %1213 = vdwg.mxu0
        %1214 = vmatpush.bf16.msra.mxu0 %v1184
        %1215 = vmatpush.bf16.msra.mxu0 %v1183
        %1216 = vmatpush.bf16.msra.mxu0 %v1182
        %1217 = vmatpush.bf16.msra.mxu0 %v1181
        %1218 = vmatpush.bf16.msra.mxu0 %v1180
        %1219 = vmatpush.bf16.msra.mxu0 %v1179
        %1220 = vmatpush.bf16.msra.mxu0 %v1178
        %1221 = vmatpush.bf16.msra.mxu0 %v1177
        %1222 = vmatmul.bf16.gmra.mxu0 %v1102
        %v1223 = vpop.f32.mrf.mxu0
        %v1224 = vadd.f32 %v1211, %v1223
        %v1225 = vpop.f32.mrf.mxu0
        %1226 = vdwg.mxu0
        %v1227 = vadd.f32 %v1063, %v1224
        %1228 = vst [vmem:[%s1062] sm:$0xff] %v1227
        %s1229 = scalar_lea.vmem [#allocation2], 16
        %v1230 = vld [vmem:[%s1229] sm:$0xff]
        %v1231 = vld [vmem:[%s882] sm:$0xff]
        %s1232 = scalar_lea.vmem %s790, 256 [#allocation3]
        %v1233 = vld [vmem:[%s1232] sm:$0xf]
        %v1234 = vld [vmem:[%s1232 + $0x4] sm:$0xf]
        %v1235 = vld [vmem:[%s1232 + $0x8] sm:$0xf]
        %v1236 = vld [vmem:[%s1232 + $0xc] sm:$0xf]
        %v1237 = vld [vmem:[%s1232 + $0x10] sm:$0xf]
        %v1238 = vld [vmem:[%s1232 + $0x14] sm:$0xf]
        %v1239 = vld [vmem:[%s1232 + $0x18] sm:$0xf]
        %v1240 = vld [vmem:[%s1232 + $0x1c] sm:$0xf]
        %v1241 = vld [vmem:[%s1232 + $0x20] sm:$0xf]
        %v1242 = vld [vmem:[%s1232 + $0x24] sm:$0xf]
        %v1243 = vld [vmem:[%s1232 + $0x28] sm:$0xf]
        %v1244 = vld [vmem:[%s1232 + $0x2c] sm:$0xf]
        %v1245 = vld [vmem:[%s1232 + $0x30] sm:$0xf]
        %v1246 = vld [vmem:[%s1232 + $0x34] sm:$0xf]
        %v1247 = vld [vmem:[%s1232 + $0x38] sm:$0xf]
        %v1248 = vld [vmem:[%s1232 + $0x3c] sm:$0xf]
        %v1249 = vld [vmem:[%s1232 + $0x40] sm:$0xf]
        %v1250 = vld [vmem:[%s1232 + $0x44] sm:$0xf]
        %v1251 = vld [vmem:[%s1232 + $0x48] sm:$0xf]
        %v1252 = vld [vmem:[%s1232 + $0x4c] sm:$0xf]
        %v1253 = vld [vmem:[%s1232 + $0x50] sm:$0xf]
        %v1254 = vld [vmem:[%s1232 + $0x54] sm:$0xf]
        %v1255 = vld [vmem:[%s1232 + $0x58] sm:$0xf]
        %v1256 = vld [vmem:[%s1232 + $0x5c] sm:$0xf]
        %v1257 = vld [vmem:[%s1232 + $0x60] sm:$0xf]
        %v1258 = vld [vmem:[%s1232 + $0x64] sm:$0xf]
        %v1259 = vld [vmem:[%s1232 + $0x68] sm:$0xf]
        %v1260 = vld [vmem:[%s1232 + $0x6c] sm:$0xf]
        %v1261 = vld [vmem:[%s1232 + $0x70] sm:$0xf]
        %v1262 = vld [vmem:[%s1232 + $0x74] sm:$0xf]
        %v1263 = vld [vmem:[%s1232 + $0x78] sm:$0xf]
        %v1264 = vld [vmem:[%s1232 + $0x7c] sm:$0xf]
        %v1266 = vunpack.c.l.b16 %v1231
        %v1267 = vunpack.c.h.b16 %v1231
        %v1268 = vpack.c.b16 %v1266, %v1266
        %v1269 = vpack.c.b16 %v1267, %v1267
        %v1304 = vunpack.c.l.b16 %v1233
        %v1305 = vunpack.c.l.b16 %v1234
        %v1306 = vunpack.c.l.b16 %v1235
        %v1307 = vunpack.c.l.b16 %v1236
        %v1308 = vunpack.c.l.b16 %v1237
        %v1309 = vunpack.c.l.b16 %v1238
        %v1310 = vunpack.c.l.b16 %v1239
        %v1311 = vunpack.c.l.b16 %v1240
        %v1312 = vunpack.c.l.b16 %v1241
        %v1313 = vunpack.c.l.b16 %v1242
        %v1314 = vunpack.c.l.b16 %v1243
        %v1315 = vunpack.c.l.b16 %v1244
        %v1316 = vunpack.c.l.b16 %v1245
        %v1317 = vunpack.c.l.b16 %v1246
        %v1318 = vunpack.c.l.b16 %v1247
        %v1319 = vunpack.c.l.b16 %v1248
        %v1320 = vunpack.c.l.b16 %v1249
        %v1321 = vunpack.c.l.b16 %v1250
        %v1322 = vunpack.c.l.b16 %v1251
        %v1323 = vunpack.c.l.b16 %v1252
        %v1324 = vunpack.c.l.b16 %v1253
        %v1325 = vunpack.c.l.b16 %v1254
        %v1326 = vunpack.c.l.b16 %v1255
        %v1327 = vunpack.c.l.b16 %v1256
        %v1328 = vunpack.c.l.b16 %v1257
        %v1329 = vunpack.c.l.b16 %v1258
        %v1330 = vunpack.c.l.b16 %v1259
        %v1331 = vunpack.c.l.b16 %v1260
        %v1332 = vunpack.c.l.b16 %v1261
        %v1333 = vunpack.c.l.b16 %v1262
        %v1334 = vunpack.c.l.b16 %v1263
        %v1335 = vunpack.c.l.b16 %v1264
        %v1336 = vpack.c.b16 %v1305, %v1304
        %v1337 = vpack.c.b16 %v1307, %v1306
        %v1338 = vpack.c.b16 %v1309, %v1308
        %v1339 = vpack.c.b16 %v1311, %v1310
        %v1340 = vpack.c.b16 %v1313, %v1312
        %v1341 = vpack.c.b16 %v1315, %v1314
        %v1342 = vpack.c.b16 %v1317, %v1316
        %v1343 = vpack.c.b16 %v1319, %v1318
        %v1344 = vpack.c.b16 %v1321, %v1320
        %v1345 = vpack.c.b16 %v1323, %v1322
        %v1346 = vpack.c.b16 %v1325, %v1324
        %v1347 = vpack.c.b16 %v1327, %v1326
        %v1348 = vpack.c.b16 %v1329, %v1328
        %v1349 = vpack.c.b16 %v1331, %v1330
        %v1350 = vpack.c.b16 %v1333, %v1332
        %v1351 = vpack.c.b16 %v1335, %v1334
        %1368 = vmatpush.bf16.msra.mxu0 %v1343
        %1369 = vmatpush.bf16.msra.mxu0 %v1342
        %1370 = vmatpush.bf16.msra.mxu0 %v1341
        %1371 = vmatpush.bf16.msra.mxu0 %v1340
        %1372 = vmatpush.bf16.msra.mxu0 %v1339
        %1373 = vmatpush.bf16.msra.mxu0 %v1338
        %1374 = vmatpush.bf16.msra.mxu0 %v1337
        %1375 = vmatpush.bf16.msra.mxu0 %v1336
        %1376 = vmatmul.bf16.gmra.mxu0 %v1268
        %v1377 = vpop.f32.mrf.mxu0
        %v1378 = vadd.f32 0.0, %v1377
        %v1379 = vpop.f32.mrf.mxu0
        %1380 = vdwg.mxu0
        %1381 = vmatpush.bf16.msra.mxu0 %v1351
        %1382 = vmatpush.bf16.msra.mxu0 %v1350
        %1383 = vmatpush.bf16.msra.mxu0 %v1349
        %1384 = vmatpush.bf16.msra.mxu0 %v1348
        %1385 = vmatpush.bf16.msra.mxu0 %v1347
        %1386 = vmatpush.bf16.msra.mxu0 %v1346
        %1387 = vmatpush.bf16.msra.mxu0 %v1345
        %1388 = vmatpush.bf16.msra.mxu0 %v1344
        %1389 = vmatmul.bf16.gmra.mxu0 %v1269
        %v1390 = vpop.f32.mrf.mxu0
        %v1391 = vadd.f32 %v1378, %v1390
        %v1392 = vpop.f32.mrf.mxu0
        %1393 = vdwg.mxu0
        %v1394 = vadd.f32 %v1230, %v1391
        %1395 = vst [vmem:[%s1229] sm:$0xff] %v1394
        %p1396 = scmp.eq.s32.totalorder %s25, 2
        // Predicated region
        $region102: #{resnet_cnn_ex_forward.1} parent=92 // pred_check
          %p1397 = pneg %p1396
        $region103: #{resnet_cnn_ex_forward.1} parent=92 // pred_check_branch
          %1399 = sbr.rel (%p1397) target = $region105
        $region104: #{resnet_cnn_ex_forward.1} parent=92 // pred_region
          %v1400 = vld [vmem:[#allocation2] sm:$0xff]
          %v1401 = vld [vmem:[%s4] sm:$0x1]
          %v1403 = vperm.slane %v1401, 0
          %v1405 = vadd.f32 %v1400, %v1403
          %v1406 = vmax.f32 %v1405, 0.0
          %v1407 = vpack.c.bf16 %v1406, %v1406
          %v1408 = vld [vmem:[%s5] sm:$0xf]
          %v1409 = vld [vmem:[%s5 + $0x4] sm:$0xf]
          %v1410 = vld [vmem:[%s5 + $0x8] sm:$0xf]
          %v1411 = vld [vmem:[%s5 + $0xc] sm:$0xf]
          %v1412 = vld [vmem:[%s5 + $0x10] sm:$0xf]
          %v1413 = vld [vmem:[%s5 + $0x14] sm:$0xf]
          %v1414 = vld [vmem:[%s5 + $0x18] sm:$0xf]
          %v1415 = vld [vmem:[%s5 + $0x1c] sm:$0xf]
          %v1416 = vld [vmem:[%s5 + $0x20] sm:$0xf]
          %v1417 = vld [vmem:[%s5 + $0x24] sm:$0xf]
          %v1418 = vld [vmem:[%s5 + $0x28] sm:$0xf]
          %v1419 = vld [vmem:[%s5 + $0x2c] sm:$0xf]
          %v1420 = vld [vmem:[%s5 + $0x30] sm:$0xf]
          %v1421 = vld [vmem:[%s5 + $0x34] sm:$0xf]
          %v1422 = vld [vmem:[%s5 + $0x38] sm:$0xf]
          %v1423 = vld [vmem:[%s5 + $0x3c] sm:$0xf]
          %v1424 = vld [vmem:[%s6] sm:$0x1]
          %v1426 = vperm.slane %v1424, 0
          %v1444 = vunpack.c.l.b16 %v1408
          %v1445 = vunpack.c.l.b16 %v1409
          %v1446 = vunpack.c.l.b16 %v1410
          %v1447 = vunpack.c.l.b16 %v1411
          %v1448 = vunpack.c.l.b16 %v1412
          %v1449 = vunpack.c.l.b16 %v1413
          %v1450 = vunpack.c.l.b16 %v1414
          %v1451 = vunpack.c.l.b16 %v1415
          %v1452 = vunpack.c.l.b16 %v1416
          %v1453 = vunpack.c.l.b16 %v1417
          %v1454 = vunpack.c.l.b16 %v1418
          %v1455 = vunpack.c.l.b16 %v1419
          %v1456 = vunpack.c.l.b16 %v1420
          %v1457 = vunpack.c.l.b16 %v1421
          %v1458 = vunpack.c.l.b16 %v1422
          %v1459 = vunpack.c.l.b16 %v1423
          %v1460 = vpack.c.b16 %v1445, %v1444
          %v1461 = vpack.c.b16 %v1447, %v1446
          %v1462 = vpack.c.b16 %v1449, %v1448
          %v1463 = vpack.c.b16 %v1451, %v1450
          %v1464 = vpack.c.b16 %v1453, %v1452
          %v1465 = vpack.c.b16 %v1455, %v1454
          %v1466 = vpack.c.b16 %v1457, %v1456
          %v1467 = vpack.c.b16 %v1459, %v1458
          %1476 = vmatpush.bf16.msra.mxu0 %v1467
          %1477 = vmatpush.bf16.msra.mxu0 %v1466
          %1478 = vmatpush.bf16.msra.mxu0 %v1465
          %1479 = vmatpush.bf16.msra.mxu0 %v1464
          %1480 = vmatpush.bf16.msra.mxu0 %v1463
          %1481 = vmatpush.bf16.msra.mxu0 %v1462
          %1482 = vmatpush.bf16.msra.mxu0 %v1461
          %1483 = vmatpush.bf16.msra.mxu0 %v1460
          %1484 = vmatmul.bf16.gmra.mxu0 %v1407
          %v1485 = vpop.f32.mrf.mxu0
          %v1486 = vadd.f32 %v1426, %v1485
          %v1487 = vpop.f32.mrf.mxu0
          %1488 = vdwg.mxu0
          %v1489 = vmax.f32 %v1486, 0.0
          %v1490 = vld [vmem:[%s1062] sm:$0xff]
          %s1491 = scalar_lea.vmem %s4, 1
          %v1492 = vld [vmem:[%s1491] sm:$0x1]
          %v1494 = vperm.slane %v1492, 0
          %v1496 = vadd.f32 %v1490, %v1494
          %v1497 = vmax.f32 %v1496, 0.0
          %v1498 = vpack.c.bf16 %v1497, %v1497
          %s1499 = scalar_lea.vmem %s5, 64
          %v1500 = vld [vmem:[%s1499] sm:$0xf]
          %v1501 = vld [vmem:[%s1499 + $0x4] sm:$0xf]
          %v1502 = vld [vmem:[%s1499 + $0x8] sm:$0xf]
          %v1503 = vld [vmem:[%s1499 + $0xc] sm:$0xf]
          %v1504 = vld [vmem:[%s1499 + $0x10] sm:$0xf]
          %v1505 = vld [vmem:[%s1499 + $0x14] sm:$0xf]
          %v1506 = vld [vmem:[%s1499 + $0x18] sm:$0xf]
          %v1507 = vld [vmem:[%s1499 + $0x1c] sm:$0xf]
          %v1508 = vld [vmem:[%s1499 + $0x20] sm:$0xf]
          %v1509 = vld [vmem:[%s1499 + $0x24] sm:$0xf]
          %v1510 = vld [vmem:[%s1499 + $0x28] sm:$0xf]
          %v1511 = vld [vmem:[%s1499 + $0x2c] sm:$0xf]
          %v1512 = vld [vmem:[%s1499 + $0x30] sm:$0xf]
          %v1513 = vld [vmem:[%s1499 + $0x34] sm:$0xf]
          %v1514 = vld [vmem:[%s1499 + $0x38] sm:$0xf]
          %v1515 = vld [vmem:[%s1499 + $0x3c] sm:$0xf]
          %s1516 = scalar_lea.vmem %s6, 1
          %v1517 = vld [vmem:[%s1516] sm:$0x1]
          %v1519 = vperm.slane %v1517, 0
          %v1537 = vunpack.c.l.b16 %v1500
          %v1538 = vunpack.c.l.b16 %v1501
          %v1539 = vunpack.c.l.b16 %v1502
          %v1540 = vunpack.c.l.b16 %v1503
          %v1541 = vunpack.c.l.b16 %v1504
          %v1542 = vunpack.c.l.b16 %v1505
          %v1543 = vunpack.c.l.b16 %v1506
          %v1544 = vunpack.c.l.b16 %v1507
          %v1545 = vunpack.c.l.b16 %v1508
          %v1546 = vunpack.c.l.b16 %v1509
          %v1547 = vunpack.c.l.b16 %v1510
          %v1548 = vunpack.c.l.b16 %v1511
          %v1549 = vunpack.c.l.b16 %v1512
          %v1550 = vunpack.c.l.b16 %v1513
          %v1551 = vunpack.c.l.b16 %v1514
          %v1552 = vunpack.c.l.b16 %v1515
          %v1553 = vpack.c.b16 %v1538, %v1537
          %v1554 = vpack.c.b16 %v1540, %v1539
          %v1555 = vpack.c.b16 %v1542, %v1541
          %v1556 = vpack.c.b16 %v1544, %v1543
          %v1557 = vpack.c.b16 %v1546, %v1545
          %v1558 = vpack.c.b16 %v1548, %v1547
          %v1559 = vpack.c.b16 %v1550, %v1549
          %v1560 = vpack.c.b16 %v1552, %v1551
          %1569 = vmatpush.bf16.msra.mxu0 %v1560
          %1570 = vmatpush.bf16.msra.mxu0 %v1559
          %1571 = vmatpush.bf16.msra.mxu0 %v1558
          %1572 = vmatpush.bf16.msra.mxu0 %v1557
          %1573 = vmatpush.bf16.msra.mxu0 %v1556
          %1574 = vmatpush.bf16.msra.mxu0 %v1555
          %1575 = vmatpush.bf16.msra.mxu0 %v1554
          %1576 = vmatpush.bf16.msra.mxu0 %v1553
          %1577 = vmatmul.bf16.gmra.mxu0 %v1498
          %v1578 = vpop.f32.mrf.mxu0
          %v1579 = vadd.f32 %v1519, %v1578
          %v1580 = vpop.f32.mrf.mxu0
          %1581 = vdwg.mxu0
          %v1582 = vmax.f32 %v1579, 0.0
          %v1583 = vld [vmem:[%s1229] sm:$0xff]
          %s1584 = scalar_lea.vmem %s4, 2
          %v1585 = vld [vmem:[%s1584] sm:$0x1]
          %v1587 = vperm.slane %v1585, 0
          %v1589 = vadd.f32 %v1583, %v1587
          %v1590 = vmax.f32 %v1589, 0.0
          %v1591 = vpack.c.bf16 %v1590, %v1590
          %s1592 = scalar_lea.vmem %s5, 128
          %v1593 = vld [vmem:[%s1592] sm:$0xf]
          %v1594 = vld [vmem:[%s1592 + $0x4] sm:$0xf]
          %v1595 = vld [vmem:[%s1592 + $0x8] sm:$0xf]
          %v1596 = vld [vmem:[%s1592 + $0xc] sm:$0xf]
          %v1597 = vld [vmem:[%s1592 + $0x10] sm:$0xf]
          %v1598 = vld [vmem:[%s1592 + $0x14] sm:$0xf]
          %v1599 = vld [vmem:[%s1592 + $0x18] sm:$0xf]
          %v1600 = vld [vmem:[%s1592 + $0x1c] sm:$0xf]
          %v1601 = vld [vmem:[%s1592 + $0x20] sm:$0xf]
          %v1602 = vld [vmem:[%s1592 + $0x24] sm:$0xf]
          %v1603 = vld [vmem:[%s1592 + $0x28] sm:$0xf]
          %v1604 = vld [vmem:[%s1592 + $0x2c] sm:$0xf]
          %v1605 = vld [vmem:[%s1592 + $0x30] sm:$0xf]
          %v1606 = vld [vmem:[%s1592 + $0x34] sm:$0xf]
          %v1607 = vld [vmem:[%s1592 + $0x38] sm:$0xf]
          %v1608 = vld [vmem:[%s1592 + $0x3c] sm:$0xf]
          %s1609 = scalar_lea.vmem %s6, 2
          %v1610 = vld [vmem:[%s1609] sm:$0x1]
          %v1612 = vperm.slane %v1610, 0
          %v1630 = vunpack.c.l.b16 %v1593
          %v1631 = vunpack.c.l.b16 %v1594
          %v1632 = vunpack.c.l.b16 %v1595
          %v1633 = vunpack.c.l.b16 %v1596
          %v1634 = vunpack.c.l.b16 %v1597
          %v1635 = vunpack.c.l.b16 %v1598
          %v1636 = vunpack.c.l.b16 %v1599
          %v1637 = vunpack.c.l.b16 %v1600
          %v1638 = vunpack.c.l.b16 %v1601
          %v1639 = vunpack.c.l.b16 %v1602
          %v1640 = vunpack.c.l.b16 %v1603
          %v1641 = vunpack.c.l.b16 %v1604
          %v1642 = vunpack.c.l.b16 %v1605
          %v1643 = vunpack.c.l.b16 %v1606
          %v1644 = vunpack.c.l.b16 %v1607
          %v1645 = vunpack.c.l.b16 %v1608
          %v1646 = vpack.c.b16 %v1631, %v1630
          %v1647 = vpack.c.b16 %v1633, %v1632
          %v1648 = vpack.c.b16 %v1635, %v1634
          %v1649 = vpack.c.b16 %v1637, %v1636
          %v1650 = vpack.c.b16 %v1639, %v1638
          %v1651 = vpack.c.b16 %v1641, %v1640
          %v1652 = vpack.c.b16 %v1643, %v1642
          %v1653 = vpack.c.b16 %v1645, %v1644
          %1662 = vmatpush.bf16.msra.mxu0 %v1653
          %1663 = vmatpush.bf16.msra.mxu0 %v1652
          %1664 = vmatpush.bf16.msra.mxu0 %v1651
          %1665 = vmatpush.bf16.msra.mxu0 %v1650
          %1666 = vmatpush.bf16.msra.mxu0 %v1649
          %1667 = vmatpush.bf16.msra.mxu0 %v1648
          %1668 = vmatpush.bf16.msra.mxu0 %v1647
          %1669 = vmatpush.bf16.msra.mxu0 %v1646
          %1670 = vmatmul.bf16.gmra.mxu0 %v1591
          %v1671 = vpop.f32.mrf.mxu0
          %v1672 = vadd.f32 %v1612, %v1671
          %v1673 = vpop.f32.mrf.mxu0
          %1674 = vdwg.mxu0
          %v1675 = vmax.f32 %v1672, 0.0
          %v1676 = vsub.f32 %v1489, %v1582
          %v1677 = vmul.f32 %v1676, %v1676
          %1678 = vadd.xlane.f32.xlu0 %v1677
          %v1679 = vpop.xlane.xlu0 %1678
          %v1680 = vrsqrt.pop %v1679
          %v1681 = vmul.f32 %v1680, %v1679
          %v1682 = vmul.f32 %v1681, %v1680
          %v1683 = vmul.f32 0.5, %v1682
          %v1684 = vsub.f32 1.5, %v1683
          %v1685 = vmul.f32 %v1680, %v1684
          %v1686 = vmul.f32 %v1679, %v1685
          %vm1687 = vcmp.eq.f32.partialorder %v1679, inf
          %v1688 = vsel %vm1687, %v1679, %v1686
          %vm1689 = vcmp.eq.f32.partialorder %v1679, 0.0
          %v1690 = vand.u32 %v1679, 2147483648
          %v1691 = vsel %vm1689, %v1690, %v1688
          %v1692 = vsub.f32 %v1489, %v1675
          %v1693 = vmul.f32 %v1692, %v1692
          %1694 = vadd.xlane.f32.xlu0 %v1693
          %v1695 = vpop.xlane.xlu0 %1694
          %v1696 = vrsqrt.pop %v1695
          %v1697 = vmul.f32 %v1696, %v1695
          %v1698 = vmul.f32 %v1697, %v1696
          %v1699 = vmul.f32 0.5, %v1698
          %v1700 = vsub.f32 1.5, %v1699
          %v1701 = vmul.f32 %v1696, %v1700
          %v1702 = vmul.f32 %v1695, %v1701
          %vm1703 = vcmp.eq.f32.partialorder %v1695, inf
          %v1704 = vsel %vm1703, %v1695, %v1702
          %vm1705 = vcmp.eq.f32.partialorder %v1695, 0.0
          %v1706 = vand.u32 %v1695, 2147483648
          %v1707 = vsel %vm1705, %v1706, %v1704
          %v1708 = vsub.f32 %v1582, %v1675
          %v1709 = vmul.f32 %v1708, %v1708
          %1710 = vadd.xlane.f32.xlu0 %v1709
          %v1711 = vpop.xlane.xlu0 %1710
          %v1712 = vrsqrt.pop %v1711
          %v1713 = vmul.f32 %v1712, %v1711
          %v1714 = vmul.f32 %v1713, %v1712
          %v1715 = vmul.f32 0.5, %v1714
          %v1716 = vsub.f32 1.5, %v1715
          %v1717 = vmul.f32 %v1712, %v1716
          %v1718 = vmul.f32 %v1711, %v1717
          %vm1719 = vcmp.eq.f32.partialorder %v1711, inf
          %v1720 = vsel %vm1719, %v1711, %v1718
          %vm1721 = vcmp.eq.f32.partialorder %v1711, 0.0
          %v1722 = vand.u32 %v1711, 2147483648
          %v1723 = vsel %vm1721, %v1722, %v1720
          %v1724 = vadd.f32 %v1691, %v1707
          %v1725 = vadd.f32 %v1691, %v1723
          %v1726 = vadd.f32 %v1707, %v1723
          %v1727 = vadd.f32 %v1724, %v1725
          %v1728 = vadd.f32 %v1727, %v1726
          %v1729 = vadd.f32 %v1728, 1e-10
          %v1730 = vrcp.pop %v1729
          %v1731 = vmul.f32 %v1724, %v1730
          %v1732 = vmul.f32 %v1731, %v1489
          %v1733 = vmul.f32 %v1725, %v1730
          %v1734 = vmul.f32 %v1733, %v1582
          %v1735 = vadd.f32 %v1732, %v1734
          %v1736 = vmul.f32 %v1726, %v1730
          %v1737 = vmul.f32 %v1736, %v1675
          %v1738 = vadd.f32 %v1735, %v1737
          %v1739 = vpack.c.bf16 %v1738, %v1738
          %v1740 = vld [vmem:[%s7] sm:$0xf]
          %v1741 = vld [vmem:[%s7 + $0x4] sm:$0xf]
          %v1742 = vld [vmem:[%s7 + $0x8] sm:$0xf]
          %v1743 = vld [vmem:[%s7 + $0xc] sm:$0xf]
          %v1744 = vld [vmem:[%s7 + $0x10] sm:$0xf]
          %v1745 = vld [vmem:[%s7 + $0x14] sm:$0xf]
          %v1746 = vld [vmem:[%s7 + $0x18] sm:$0xf]
          %v1747 = vld [vmem:[%s7 + $0x1c] sm:$0xf]
          %v1748 = vld [vmem:[%s7 + $0x20] sm:$0xf]
          %v1749 = vld [vmem:[%s7 + $0x24] sm:$0xf]
          %v1750 = vld [vmem:[%s7 + $0x28] sm:$0xf]
          %v1751 = vld [vmem:[%s7 + $0x2c] sm:$0xf]
          %v1752 = vld [vmem:[%s7 + $0x30] sm:$0xf]
          %v1753 = vld [vmem:[%s7 + $0x34] sm:$0xf]
          %v1754 = vld [vmem:[%s7 + $0x38] sm:$0xf]
          %v1755 = vld [vmem:[%s7 + $0x3c] sm:$0xf]
          %v1756 = vld [vmem:[%s8] sm:$0x1]
          %v1758 = vperm.slane %v1756, 0
          %v1776 = vunpack.c.l.b16 %v1740
          %v1777 = vunpack.c.l.b16 %v1741
          %v1778 = vunpack.c.l.b16 %v1742
          %v1779 = vunpack.c.l.b16 %v1743
          %v1780 = vunpack.c.l.b16 %v1744
          %v1781 = vunpack.c.l.b16 %v1745
          %v1782 = vunpack.c.l.b16 %v1746
          %v1783 = vunpack.c.l.b16 %v1747
          %v1784 = vunpack.c.l.b16 %v1748
          %v1785 = vunpack.c.l.b16 %v1749
          %v1786 = vunpack.c.l.b16 %v1750
          %v1787 = vunpack.c.l.b16 %v1751
          %v1788 = vunpack.c.l.b16 %v1752
          %v1789 = vunpack.c.l.b16 %v1753
          %v1790 = vunpack.c.l.b16 %v1754
          %v1791 = vunpack.c.l.b16 %v1755
          %v1792 = vpack.c.b16 %v1777, %v1776
          %v1793 = vpack.c.b16 %v1779, %v1778
          %v1794 = vpack.c.b16 %v1781, %v1780
          %v1795 = vpack.c.b16 %v1783, %v1782
          %v1796 = vpack.c.b16 %v1785, %v1784
          %v1797 = vpack.c.b16 %v1787, %v1786
          %v1798 = vpack.c.b16 %v1789, %v1788
          %v1799 = vpack.c.b16 %v1791, %v1790
          %1808 = vmatpush.bf16.msra.mxu0 %v1799
          %1809 = vmatpush.bf16.msra.mxu0 %v1798
          %1810 = vmatpush.bf16.msra.mxu0 %v1797
          %1811 = vmatpush.bf16.msra.mxu0 %v1796
          %1812 = vmatpush.bf16.msra.mxu0 %v1795
          %1813 = vmatpush.bf16.msra.mxu0 %v1794
          %1814 = vmatpush.bf16.msra.mxu0 %v1793
          %1815 = vmatpush.bf16.msra.mxu0 %v1792
          %1816 = vmatmul.bf16.gmra.mxu0 %v1739
          %v1817 = vpop.f32.mrf.mxu0
          %v1818 = vadd.f32 %v1758, %v1817
          %v1819 = vpop.f32.mrf.mxu0
          %1820 = vdwg.mxu0
          %v1821 = vmax.f32 %v1818, 0.0
          %1822 = vst [vmem:[%s889] sm:$0xff] %v1821
        $region105: #{resnet_cnn_ex_forward.1} parent=92 // pred_fallthru
          _
        %p1823 = scmp.lt.s32.totalorder %s24, 0
        %s1824 = scalar_select %p1823, %s24, 0
        %s1825 = smul.addr %s1824, 8
        %s1826 = scalar_lea.vmem %s9, %s1825
        // Predicated region
        $region106: #{resnet_cnn_ex_forward.1} parent=92 // pred_check
          %p1827 = pneg %p269
        $region107: #{resnet_cnn_ex_forward.1} parent=92 // pred_check_branch
          %1829 = sbr.rel (%p1827) target = $region109
        $region108: #{resnet_cnn_ex_forward.1} parent=92 // pred_region
          _
        $region109: #{resnet_cnn_ex_forward.1} parent=92 // pred_fallthru
          _
        // Predicated region
        $region110: #{resnet_cnn_ex_forward.1} parent=92 // pred_check
          %p1830 = pneg %p269
        $region111: #{resnet_cnn_ex_forward.1} parent=92 // pred_check_branch
          %1832 = sbr.rel (%p1830) target = $region113
        $region112: #{resnet_cnn_ex_forward.1} parent=92 // pred_region
          %p1833 = scmp.lt.s32.totalorder %s24, 0
          %s1834 = scalar_select %p1833, %s24, 0
          %s1835 = smul.addr %s1834, 8
          %s1836 = scalar_lea.vmem %s9, %s1835
        $region113: #{resnet_cnn_ex_forward.1} parent=92 // pred_fallthru
          _
      $region93: #{resnet_cnn_ex_forward.1} parent=5 // pred_fallthru
        _
      %p1837 = scmp.le.s32.totalorder 2, %s15
      // Predicated region
      $region114: #{resnet_cnn_ex_forward.1} parent=5 // pred_check
        %p1838 = pneg %p1837
      $region115: #{resnet_cnn_ex_forward.1} parent=5 // pred_check_branch
        %1840 = sbr.rel (%p1838) target = $region117
      $region116: #{resnet_cnn_ex_forward.1} parent=5 // pred_region
        %s1841 = ssub.s32 %s15, 2
      $region117: #{resnet_cnn_ex_forward.1} parent=5 // pred_fallthru
        _
    $region6: #{resnet_cnn_ex_forward.1} parent=1 // loop_footer
      %s19 = sadd.s32 1, %s15
    $region7: #{resnet_cnn_ex_forward.1} parent=1 // loop_footer_branch
      %14 = sbr.rel target = $region3
    $region8: #{resnet_cnn_ex_forward.1} parent=1 // loop_exit
      _

</llo_original>
